<compile_context>
chip_gen: v7x
topology: tpu7x:2x2x1
jax: 0.10.0
libtpu: 0.0.40
codegen_flags: <defaults>
</compile_context>

<pallas_src>
import numpy as np
import jax
import jax.numpy as jnp
from jax import lax
from jax.experimental import pallas as pl
from jax.experimental.pallas import tpu as pltpu

LANES = 128


def _round_up(x, m):
    return (x + m - 1) // m * m


# ---------------------------------------------------------------------------
# Glue: im2col for a 3x3 "SAME" conv, emitted directly in pool-block order
# (4 contiguous tap blocks of Ho*Wo rows each) using strided slices only —
# no HBM gather.  Output is bf16 so the kernel DMA moves half the bytes and
# the MXU runs at native bf16 rate (f32 accumulate inside the kernel).
# ---------------------------------------------------------------------------
def _im2col_pool_blocks(x):
    # x: (N, H, W, C) f32 -> (N, 4, Ho*Wo, 9*C) bf16
    N, H, W, C = x.shape
    assert H % 2 == 0 and W % 2 == 0, "fused maxpool assumes even H, W"
    Ho, Wo = H // 2, W // 2
    xp = jnp.pad(x, ((0, 0), (1, 1), (1, 1), (0, 0)))

    def tap_block(dh, dw):
        # Pool-tap (dh, dw): pooled output pixel (i, j) reads conv output at
        # input pixel (2i+dh, 2j+dw); conv tap (dy, dx) reads
        # xp[2i+dh+dy, 2j+dw+dx].  Tap order (dy, dx) outer, Cin inner —
        # matches w.reshape(9*Cin, Cout).
        return jnp.concatenate(
            [xp[:, dh + dy:dh + dy + H:2, dw + dx:dw + dx + W:2, :]
             for dy in range(3) for dx in range(3)],
            axis=-1,
        )  # (N, Ho, Wo, 9*C)

    blocks = jnp.stack(
        [tap_block(dh, dw) for dh in range(2) for dw in range(2)], axis=1)
    return blocks.reshape(N, 4, Ho * Wo, 9 * C).astype(jnp.bfloat16)


def _prep_conv_params(w, b):
    # w: (3, 3, Cin, Cout), b: (1, Cout)  ->  ((9*Cin, Cpad) bf16, (1, Cpad) f32)
    kh, kw, cin, cout = w.shape
    cpad = _round_up(cout, LANES)
    wm = jnp.pad(w.reshape(kh * kw * cin, cout), ((0, 0), (0, cpad - cout)))
    bm = jnp.pad(b.reshape(1, cout), ((0, 0), (0, cpad - cout)))
    return wm.astype(jnp.bfloat16), bm.astype(jnp.float32), cout


# ---------------------------------------------------------------------------
# Pallas kernel 1: fused conv(3x3, pad=1) -> +bias -> ReLU -> maxpool 2x2.
# One grid step = one image.  The 4 pool-tap blocks are matmul'd separately
# and max-reduced on the fly, then bias+ReLU, then ONE lane-dense store.
# ---------------------------------------------------------------------------
def _conv_relu_pool_kernel(x_ref, w_ref, b_ref, o_ref):
    # x_ref: (1, 4, Ho*Wo, 9*Cin) bf16, w_ref: (9*Cin, Cpad) bf16,
    # b_ref: (1, Cpad) f32, o_ref: (1, Ho*Wo, Cpad) f32.
    w = w_ref[...]
    acc = jnp.dot(x_ref[0, 0], w, preferred_element_type=jnp.float32)
    for t in range(1, 4):
        acc = jnp.maximum(
            acc, jnp.dot(x_ref[0, t], w, preferred_element_type=jnp.float32))
    # maxpool(ReLU(conv + bias)) == ReLU(max(conv) + bias): bias-add and ReLU
    # are monotone, so pool first and apply the epilogue once.
    o_ref[0] = jnp.maximum(acc + b_ref[...], 0.0)


def _conv_relu_pool(x_col, w_mat, b_vec):
    N, _, HoWo, K = x_col.shape
    Cpad = w_mat.shape[1]
    return pl.pallas_call(
        _conv_relu_pool_kernel,
        out_shape=jax.ShapeDtypeStruct((N, HoWo, Cpad), jnp.float32),
        grid=(N,),
        in_specs=[
            pl.BlockSpec((1, 4, HoWo, K), lambda n: (n, 0, 0, 0)),
            pl.BlockSpec((K, Cpad), lambda n: (0, 0)),
            pl.BlockSpec((1, Cpad), lambda n: (0, 0)),
        ],
        out_specs=pl.BlockSpec((1, HoWo, Cpad), lambda n: (n, 0, 0)),
        compiler_params=pltpu.CompilerParams(dimension_semantics=("parallel",)),
    )(x_col, w_mat, b_vec)


# ---------------------------------------------------------------------------
# Pallas kernel 2: FC head  fc1 -> ReLU -> (dropout=identity) -> fc2,
# tiled over fc1's reduction dim so the weight DMAs are pipelined and the
# per-step VMEM footprint stays small (v5e's 16 MiB scoped default).
# ---------------------------------------------------------------------------
def _fc_head_kernel(x_ref, w1_ref, b1_ref, w2_ref, b2_ref, o_ref, h_acc):
    k = pl.program_id(0)

    @pl.when(k == 0)
    def _():
        h_acc[...] = jnp.zeros_like(h_acc)

    h_acc[...] += jnp.dot(x_ref[...], w1_ref[...],
                          preferred_element_type=jnp.float32)

    @pl.when(k == pl.num_programs(0) - 1)
    def _():
        h = jnp.maximum(h_acc[...] + b1_ref[...], 0.0)
        # TODO(synk): nn.Dropout(0.25) is the identity at inference; PyTorch's
        # RNG-based training-mode dropout is not reproduced here.
        o_ref[...] = (jnp.dot(h.astype(w2_ref.dtype), w2_ref[...],
                              preferred_element_type=jnp.float32)
                      + b2_ref[...])


def _fc_head(feats, w1, b1, w2, b2):
    N, K1 = feats.shape
    Hd = w1.shape[1]
    Cpad = w2.shape[1]
    tk = max(LANES, min(2048, K1 // 2))     # >=2 grid steps when K1 allows it
    if K1 % tk != 0:
        tk = K1
    nk = K1 // tk
    return pl.pallas_call(
        _fc_head_kernel,
        out_shape=jax.ShapeDtypeStruct((N, Cpad), jnp.float32),
        grid=(nk,),
        in_specs=[
            pl.BlockSpec((N, tk), lambda k: (0, k)),
            pl.BlockSpec((tk, Hd), lambda k: (k, 0)),
            pl.BlockSpec((1, Hd), lambda k: (0, 0)),
            pl.BlockSpec((Hd, Cpad), lambda k: (0, 0)),
            pl.BlockSpec((1, Cpad), lambda k: (0, 0)),
        ],
        out_specs=pl.BlockSpec((N, Cpad), lambda k: (0, 0)),
        scratch_shapes=[pltpu.VMEM((N, Hd), jnp.float32)],
        compiler_params=pltpu.CompilerParams(dimension_semantics=("arbitrary",)),
    )(feats, w1, b1, w2, b2)


# ---------------------------------------------------------------------------
# Full forward pass (Pallas path)
# ---------------------------------------------------------------------------
def traffic_sign_net_forward(x_nchw, params):
    (cw1, cb1), (cw2, cb2), (cw3, cb3), (fw1, fb1), (fw2, fb2) = params
    x = jnp.transpose(x_nchw, (0, 2, 3, 1)).astype(jnp.float32)  # NCHW -> NHWC

    for w, b in ((cw1, cb1), (cw2, cb2), (cw3, cb3)):
        N, H, W, _ = x.shape
        Ho, Wo = H // 2, W // 2
        wm, bm, cout = _prep_conv_params(w, b)
        x_col = _im2col_pool_blocks(x)                # (N, 4, Ho*Wo, 9*Cin) bf16
        y = _conv_relu_pool(x_col, wm, bm)            # (N, Ho*Wo, 128) f32
        x = y[:, :, :cout].reshape(N, Ho, Wo, cout)   # strip lane padding

    # FC head.  PyTorch flattens in (C, H, W) order; instead of transposing the
    # activations we permute fc1's weight rows once so the NHWC flatten matches.
    N, Ho, Wo, C = x.shape
    hidden = fw1.shape[1]
    feats = x.reshape(N, Ho * Wo * C).astype(jnp.bfloat16)
    fw1_r = (fw1.reshape(C, Ho * Wo, hidden)
                .transpose(1, 0, 2)
                .reshape(Ho * Wo * C, hidden)).astype(jnp.bfloat16)
    fb1_r = fb1.reshape(1, hidden).astype(jnp.float32)

    num_clas = fw2.shape[1]
    cpad = _round_up(num_clas, LANES)
    fw2_p = jnp.pad(fw2, ((0, 0), (0, cpad - num_clas))).astype(jnp.bfloat16)
    fb2_p = jnp.pad(fb2.reshape(1, num_clas),
                    ((0, 0), (0, cpad - num_clas))).astype(jnp.float32)

    logits = _fc_head(feats, fw1_r, fb1_r, fw2_p, fb2_p)
    return logits[:, :num_clas]


# ---------------------------------------------------------------------------
# Pure-JAX f32 reference (for correctness check)
# ---------------------------------------------------------------------------
def reference_forward(x_nchw, params):
    (cw1, cb1), (cw2, cb2), (cw3, cb3), (fw1, fb1), (fw2, fb2) = params
    x = jnp.transpose(x_nchw, (0, 2, 3, 1)).astype(jnp.float32)
    for w, b in ((cw1, cb1), (cw2, cb2), (cw3, cb3)):
        x = lax.conv_general_dilated(
            x, w, (1, 1), "SAME",
            dimension_numbers=("NHWC", "HWIO", "NHWC"),
            precision=lax.Precision.HIGHEST,
        )
        x = jnp.maximum(x + b.reshape(1, 1, 1, -1), 0.0)
        x = lax.reduce_window(x, -jnp.inf, lax.max,
                              (1, 2, 2, 1), (1, 2, 2, 1), "VALID")
    feats = jnp.transpose(x, (0, 3, 1, 2)).reshape(x.shape[0], -1)
    h = jnp.maximum(feats @ fw1 + fb1, 0.0)
    return h @ fw2 + fb2


# ---------------------------------------------------------------------------
# Main
# ---------------------------------------------------------------------------
if __name__ == "__main__":
    key = jax.random.PRNGKey(0)
    ks = jax.random.split(key, 12)

    N, H0, W0 = 2, 16, 16      # small spatial size (module default is 128x128)
    num_clas = 5

    x = jax.random.normal(ks[0], (N, 3, H0, W0), jnp.float32)  # NCHW like PyTorch

    def init_conv(kw_, kb_, cin, cout):
        w = jax.random.normal(kw_, (3, 3, cin, cout), jnp.float32) / np.sqrt(9 * cin)
        b = jax.random.normal(kb_, (1, cout), jnp.float32) * 0.01
        return w, b

    def init_fc(kw_, kb_, fin, fout):
        w = jax.random.normal(kw_, (fin, fout), jnp.float32) / np.sqrt(fin)
        b = jax.random.normal(kb_, (1, fout), jnp.float32) * 0.01
        return w, b

    conv1 = init_conv(ks[1], ks[2], 3, 16)
    conv2 = init_conv(ks[3], ks[4], 16, 32)
    conv3 = init_conv(ks[5], ks[6], 32, 64)
    feat_dim = 64 * (H0 // 8) * (W0 // 8)          # 64 * 2 * 2 = 256
    fc1 = init_fc(ks[7], ks[8], feat_dim, 256)
    fc2 = init_fc(ks[9], ks[10], 256, num_clas)

    params = (conv1, conv2, conv3, fc1, fc2)

    out = jax.jit(traffic_sign_net_forward)(x, params)
    out = jax.block_until_ready(out)

    assert out.shape == (N, num_clas), out.shape

    ref = reference_forward(x, params)
    # bf16 matmul operands (f32 accumulate) vs the f32-HIGHEST reference.
    if not np.allclose(np.asarray(out), np.asarray(ref), rtol=5e-2, atol=5e-2):
        raise AssertionError("Pallas output does not match JAX reference")

    print("KERNEL_OK")
</pallas_src>

<mosaic_0001>
module attributes {stable_mosaic.version = 11 : i64} {
  func.func @_conv_relu_pool_kernel(%arg0: i32, %arg1: memref<1x4x64x27xbf16, #tpu.memory_space<vmem>>, %arg2: memref<27x128xbf16, #tpu.memory_space<vmem>>, %arg3: memref<1x128xf32, #tpu.memory_space<vmem>>, %arg4: memref<1x64x128xf32, #tpu.memory_space<vmem>>) attributes {dimension_semantics = [#tpu.dimension_semantics<parallel>], iteration_bounds = array<i64: 2>, scalar_prefetch = 0 : i64, scratch_operands = 0 : i64, tpu.core_type = #tpu.core_type<tc>, window_params = [{transform_indices = @transform_0, window_bounds = array<i64: 1, 4, 64, 27>}, {pipeline_mode = #tpu.pipeline_mode<synchronous>, transform_indices = @transform_1, window_bounds = array<i64: 27, 128>}, {pipeline_mode = #tpu.pipeline_mode<synchronous>, transform_indices = @transform_2, window_bounds = array<i64: 1, 128>}, {transform_indices = @transform_3, window_bounds = array<i64: 1, 64, 128>}]} {
    %c0 = arith.constant 0 : index
    %c0_0 = arith.constant 0 : index
    %0 = vector.load %arg2[%c0, %c0_0] : memref<27x128xbf16, #tpu.memory_space<vmem>>, vector<27x128xbf16>
    %c0_1 = arith.constant 0 : index
    %c0_2 = arith.constant 0 : index
    %c0_3 = arith.constant 0 : index
    %c0_4 = arith.constant 0 : index
    %1 = vector.load %arg1[%c0_1, %c0_2, %c0_3, %c0_4] : memref<1x4x64x27xbf16, #tpu.memory_space<vmem>>, vector<1x1x64x27xbf16>
    %2 = vector.shape_cast %1 : vector<1x1x64x27xbf16> to vector<64x27xbf16>
    %cst = arith.constant dense<0.000000e+00> : vector<64x128xf32>
    %3 = tpu.matmul %2, %0, %cst {dimension_numbers = #tpu.dot_dimension_numbers<[1], [0], [0], [1], [0, 0, 1, 1], [], []>} : vector<64x27xbf16>, vector<27x128xbf16>, vector<64x128xf32> -> vector<64x128xf32>
    %c0_5 = arith.constant 0 : index
    %c1 = arith.constant 1 : index
    %c0_6 = arith.constant 0 : index
    %c0_7 = arith.constant 0 : index
    %4 = vector.load %arg1[%c0_5, %c1, %c0_6, %c0_7] : memref<1x4x64x27xbf16, #tpu.memory_space<vmem>>, vector<1x1x64x27xbf16>
    %5 = vector.shape_cast %4 : vector<1x1x64x27xbf16> to vector<64x27xbf16>
    %cst_8 = arith.constant dense<0.000000e+00> : vector<64x128xf32>
    %6 = tpu.matmul %5, %0, %cst_8 {dimension_numbers = #tpu.dot_dimension_numbers<[1], [0], [0], [1], [0, 0, 1, 1], [], []>} : vector<64x27xbf16>, vector<27x128xbf16>, vector<64x128xf32> -> vector<64x128xf32>
    %7 = arith.maximumf %3, %6 : vector<64x128xf32>
    %c0_9 = arith.constant 0 : index
    %c2 = arith.constant 2 : index
    %c0_10 = arith.constant 0 : index
    %c0_11 = arith.constant 0 : index
    %8 = vector.load %arg1[%c0_9, %c2, %c0_10, %c0_11] : memref<1x4x64x27xbf16, #tpu.memory_space<vmem>>, vector<1x1x64x27xbf16>
    %9 = vector.shape_cast %8 : vector<1x1x64x27xbf16> to vector<64x27xbf16>
    %cst_12 = arith.constant dense<0.000000e+00> : vector<64x128xf32>
    %10 = tpu.matmul %9, %0, %cst_12 {dimension_numbers = #tpu.dot_dimension_numbers<[1], [0], [0], [1], [0, 0, 1, 1], [], []>} : vector<64x27xbf16>, vector<27x128xbf16>, vector<64x128xf32> -> vector<64x128xf32>
    %11 = arith.maximumf %7, %10 : vector<64x128xf32>
    %c0_13 = arith.constant 0 : index
    %c3 = arith.constant 3 : index
    %c0_14 = arith.constant 0 : index
    %c0_15 = arith.constant 0 : index
    %12 = vector.load %arg1[%c0_13, %c3, %c0_14, %c0_15] : memref<1x4x64x27xbf16, #tpu.memory_space<vmem>>, vector<1x1x64x27xbf16>
    %13 = vector.shape_cast %12 : vector<1x1x64x27xbf16> to vector<64x27xbf16>
    %cst_16 = arith.constant dense<0.000000e+00> : vector<64x128xf32>
    %14 = tpu.matmul %13, %0, %cst_16 {dimension_numbers = #tpu.dot_dimension_numbers<[1], [0], [0], [1], [0, 0, 1, 1], [], []>} : vector<64x27xbf16>, vector<27x128xbf16>, vector<64x128xf32> -> vector<64x128xf32>
    %15 = arith.maximumf %11, %14 : vector<64x128xf32>
    %c0_17 = arith.constant 0 : index
    %c0_18 = arith.constant 0 : index
    %16 = vector.load %arg3[%c0_17, %c0_18] : memref<1x128xf32, #tpu.memory_space<vmem>>, vector<1x128xf32>
    %17 = vector.broadcast %16 : vector<1x128xf32> to vector<64x128xf32>
    %18 = arith.addf %15, %17 : vector<64x128xf32>
    %cst_19 = arith.constant 0.000000e+00 : f32
    %19 = vector.broadcast %cst_19 : f32 to vector<64x128xf32>
    %20 = arith.maximumf %18, %19 : vector<64x128xf32>
    %c0_20 = arith.constant 0 : index
    %c0_21 = arith.constant 0 : index
    %c0_22 = arith.constant 0 : index
    %21 = vector.load %arg4[%c0_20, %c0_21, %c0_22] : memref<1x64x128xf32, #tpu.memory_space<vmem>>, vector<1x64x128xf32>
    %22 = vector.shape_cast %21 : vector<1x64x128xf32> to vector<64x128xf32>
    %23 = vector.shape_cast %20 : vector<64x128xf32> to vector<1x64x128xf32>
    tpu.vector_store %arg4[%c0_20, %c0_21, %c0_22], %23 {strides = array<i32>} : memref<1x64x128xf32, #tpu.memory_space<vmem>>, vector<1x64x128xf32>,
    return
  }
  func.func @transform_0(%arg0: i32) -> (i32, i32, i32, i32) {
    %c0_i32 = arith.constant 0 : i32
    %c0_i32_0 = arith.constant 0 : i32
    %c0_i32_1 = arith.constant 0 : i32
    %c0_i32_2 = arith.constant 0 : i32
    return %arg0, %c0_i32, %c0_i32_0, %c0_i32_1 : i32, i32, i32, i32
  }
  func.func @transform_1(%arg0: i32) -> (i32, i32) {
    %c0_i32 = arith.constant 0 : i32
    %c0_i32_0 = arith.constant 0 : i32
    %c0_i32_1 = arith.constant 0 : i32
    return %c0_i32, %c0_i32_0 : i32, i32
  }
  func.func @transform_2(%arg0: i32) -> (i32, i32) {
    %c0_i32 = arith.constant 0 : i32
    %c0_i32_0 = arith.constant 0 : i32
    %c0_i32_1 = arith.constant 0 : i32
    return %c0_i32, %c0_i32_0 : i32, i32
  }
  func.func @transform_3(%arg0: i32) -> (i32, i32, i32) {
    %c0_i32 = arith.constant 0 : i32
    %c0_i32_0 = arith.constant 0 : i32
    %c0_i32_1 = arith.constant 0 : i32
    return %arg0, %c0_i32, %c0_i32_0 : i32, i32, i32
  }
}

module attributes {stable_mosaic.version = 11 : i64} {
  func.func @_conv_relu_pool_kernel(%arg0: i32, %arg1: memref<1x4x16x144xbf16, #tpu.memory_space<vmem>>, %arg2: memref<144x128xbf16, #tpu.memory_space<vmem>>, %arg3: memref<1x128xf32, #tpu.memory_space<vmem>>, %arg4: memref<1x16x128xf32, #tpu.memory_space<vmem>>) attributes {dimension_semantics = [#tpu.dimension_semantics<parallel>], iteration_bounds = array<i64: 2>, scalar_prefetch = 0 : i64, scratch_operands = 0 : i64, tpu.core_type = #tpu.core_type<tc>, window_params = [{transform_indices = @transform_0, window_bounds = array<i64: 1, 4, 16, 144>}, {pipeline_mode = #tpu.pipeline_mode<synchronous>, transform_indices = @transform_1, window_bounds = array<i64: 144, 128>}, {pipeline_mode = #tpu.pipeline_mode<synchronous>, transform_indices = @transform_2, window_bounds = array<i64: 1, 128>}, {transform_indices = @transform_3, window_bounds = array<i64: 1, 16, 128>}]} {
    %c0 = arith.constant 0 : index
    %c0_0 = arith.constant 0 : index
    %0 = vector.load %arg2[%c0, %c0_0] : memref<144x128xbf16, #tpu.memory_space<vmem>>, vector<144x128xbf16>
    %c0_1 = arith.constant 0 : index
    %c0_2 = arith.constant 0 : index
    %c0_3 = arith.constant 0 : index
    %c0_4 = arith.constant 0 : index
    %1 = vector.load %arg1[%c0_1, %c0_2, %c0_3, %c0_4] : memref<1x4x16x144xbf16, #tpu.memory_space<vmem>>, vector<1x1x16x144xbf16>
    %2 = vector.shape_cast %1 : vector<1x1x16x144xbf16> to vector<16x144xbf16>
    %cst = arith.constant dense<0.000000e+00> : vector<16x128xf32>
    %3 = tpu.matmul %2, %0, %cst {dimension_numbers = #tpu.dot_dimension_numbers<[1], [0], [0], [1], [0, 0, 1, 1], [], []>} : vector<16x144xbf16>, vector<144x128xbf16>, vector<16x128xf32> -> vector<16x128xf32>
    %c0_5 = arith.constant 0 : index
    %c1 = arith.constant 1 : index
    %c0_6 = arith.constant 0 : index
    %c0_7 = arith.constant 0 : index
    %4 = vector.load %arg1[%c0_5, %c1, %c0_6, %c0_7] : memref<1x4x16x144xbf16, #tpu.memory_space<vmem>>, vector<1x1x16x144xbf16>
    %5 = vector.shape_cast %4 : vector<1x1x16x144xbf16> to vector<16x144xbf16>
    %cst_8 = arith.constant dense<0.000000e+00> : vector<16x128xf32>
    %6 = tpu.matmul %5, %0, %cst_8 {dimension_numbers = #tpu.dot_dimension_numbers<[1], [0], [0], [1], [0, 0, 1, 1], [], []>} : vector<16x144xbf16>, vector<144x128xbf16>, vector<16x128xf32> -> vector<16x128xf32>
    %7 = arith.maximumf %3, %6 : vector<16x128xf32>
    %c0_9 = arith.constant 0 : index
    %c2 = arith.constant 2 : index
    %c0_10 = arith.constant 0 : index
    %c0_11 = arith.constant 0 : index
    %8 = vector.load %arg1[%c0_9, %c2, %c0_10, %c0_11] : memref<1x4x16x144xbf16, #tpu.memory_space<vmem>>, vector<1x1x16x144xbf16>
    %9 = vector.shape_cast %8 : vector<1x1x16x144xbf16> to vector<16x144xbf16>
    %cst_12 = arith.constant dense<0.000000e+00> : vector<16x128xf32>
    %10 = tpu.matmul %9, %0, %cst_12 {dimension_numbers = #tpu.dot_dimension_numbers<[1], [0], [0], [1], [0, 0, 1, 1], [], []>} : vector<16x144xbf16>, vector<144x128xbf16>, vector<16x128xf32> -> vector<16x128xf32>
    %11 = arith.maximumf %7, %10 : vector<16x128xf32>
    %c0_13 = arith.constant 0 : index
    %c3 = arith.constant 3 : index
    %c0_14 = arith.constant 0 : index
    %c0_15 = arith.constant 0 : index
    %12 = vector.load %arg1[%c0_13, %c3, %c0_14, %c0_15] : memref<1x4x16x144xbf16, #tpu.memory_space<vmem>>, vector<1x1x16x144xbf16>
    %13 = vector.shape_cast %12 : vector<1x1x16x144xbf16> to vector<16x144xbf16>
    %cst_16 = arith.constant dense<0.000000e+00> : vector<16x128xf32>
    %14 = tpu.matmul %13, %0, %cst_16 {dimension_numbers = #tpu.dot_dimension_numbers<[1], [0], [0], [1], [0, 0, 1, 1], [], []>} : vector<16x144xbf16>, vector<144x128xbf16>, vector<16x128xf32> -> vector<16x128xf32>
    %15 = arith.maximumf %11, %14 : vector<16x128xf32>
    %c0_17 = arith.constant 0 : index
    %c0_18 = arith.constant 0 : index
    %16 = vector.load %arg3[%c0_17, %c0_18] : memref<1x128xf32, #tpu.memory_space<vmem>>, vector<1x128xf32>
    %17 = vector.broadcast %16 : vector<1x128xf32> to vector<16x128xf32>
    %18 = arith.addf %15, %17 : vector<16x128xf32>
    %cst_19 = arith.constant 0.000000e+00 : f32
    %19 = vector.broadcast %cst_19 : f32 to vector<16x128xf32>
    %20 = arith.maximumf %18, %19 : vector<16x128xf32>
    %c0_20 = arith.constant 0 : index
    %c0_21 = arith.constant 0 : index
    %c0_22 = arith.constant 0 : index
    %21 = vector.load %arg4[%c0_20, %c0_21, %c0_22] : memref<1x16x128xf32, #tpu.memory_space<vmem>>, vector<1x16x128xf32>
    %22 = vector.shape_cast %21 : vector<1x16x128xf32> to vector<16x128xf32>
    %23 = vector.shape_cast %20 : vector<16x128xf32> to vector<1x16x128xf32>
    tpu.vector_store %arg4[%c0_20, %c0_21, %c0_22], %23 {strides = array<i32>} : memref<1x16x128xf32, #tpu.memory_space<vmem>>, vector<1x16x128xf32>,
    return
  }
  func.func @transform_0(%arg0: i32) -> (i32, i32, i32, i32) {
    %c0_i32 = arith.constant 0 : i32
    %c0_i32_0 = arith.constant 0 : i32
    %c0_i32_1 = arith.constant 0 : i32
    %c0_i32_2 = arith.constant 0 : i32
    return %arg0, %c0_i32, %c0_i32_0, %c0_i32_1 : i32, i32, i32, i32
  }
  func.func @transform_1(%arg0: i32) -> (i32, i32) {
    %c0_i32 = arith.constant 0 : i32
    %c0_i32_0 = arith.constant 0 : i32
    %c0_i32_1 = arith.constant 0 : i32
    return %c0_i32, %c0_i32_0 : i32, i32
  }
  func.func @transform_2(%arg0: i32) -> (i32, i32) {
    %c0_i32 = arith.constant 0 : i32
    %c0_i32_0 = arith.constant 0 : i32
    %c0_i32_1 = arith.constant 0 : i32
    return %c0_i32, %c0_i32_0 : i32, i32
  }
  func.func @transform_3(%arg0: i32) -> (i32, i32, i32) {
    %c0_i32 = arith.constant 0 : i32
    %c0_i32_0 = arith.constant 0 : i32
    %c0_i32_1 = arith.constant 0 : i32
    return %arg0, %c0_i32, %c0_i32_0 : i32, i32, i32
  }
}

module attributes {stable_mosaic.version = 11 : i64} {
  func.func @_conv_relu_pool_kernel(%arg0: i32, %arg1: memref<1x4x4x288xbf16, #tpu.memory_space<vmem>>, %arg2: memref<288x128xbf16, #tpu.memory_space<vmem>>, %arg3: memref<1x128xf32, #tpu.memory_space<vmem>>, %arg4: memref<1x4x128xf32, #tpu.memory_space<vmem>>) attributes {dimension_semantics = [#tpu.dimension_semantics<parallel>], iteration_bounds = array<i64: 2>, scalar_prefetch = 0 : i64, scratch_operands = 0 : i64, tpu.core_type = #tpu.core_type<tc>, window_params = [{transform_indices = @transform_0, window_bounds = array<i64: 1, 4, 4, 288>}, {pipeline_mode = #tpu.pipeline_mode<synchronous>, transform_indices = @transform_1, window_bounds = array<i64: 288, 128>}, {pipeline_mode = #tpu.pipeline_mode<synchronous>, transform_indices = @transform_2, window_bounds = array<i64: 1, 128>}, {transform_indices = @transform_3, window_bounds = array<i64: 1, 4, 128>}]} {
    %c0 = arith.constant 0 : index
    %c0_0 = arith.constant 0 : index
    %0 = vector.load %arg2[%c0, %c0_0] : memref<288x128xbf16, #tpu.memory_space<vmem>>, vector<288x128xbf16>
    %c0_1 = arith.constant 0 : index
    %c0_2 = arith.constant 0 : index
    %c0_3 = arith.constant 0 : index
    %c0_4 = arith.constant 0 : index
    %1 = vector.load %arg1[%c0_1, %c0_2, %c0_3, %c0_4] : memref<1x4x4x288xbf16, #tpu.memory_space<vmem>>, vector<1x1x4x288xbf16>
    %2 = vector.shape_cast %1 : vector<1x1x4x288xbf16> to vector<4x288xbf16>
    %cst = arith.constant dense<0.000000e+00> : vector<4x128xf32>
    %3 = tpu.matmul %2, %0, %cst {dimension_numbers = #tpu.dot_dimension_numbers<[1], [0], [0], [1], [0, 0, 1, 1], [], []>} : vector<4x288xbf16>, vector<288x128xbf16>, vector<4x128xf32> -> vector<4x128xf32>
    %c0_5 = arith.constant 0 : index
    %c1 = arith.constant 1 : index
    %c0_6 = arith.constant 0 : index
    %c0_7 = arith.constant 0 : index
    %4 = vector.load %arg1[%c0_5, %c1, %c0_6, %c0_7] : memref<1x4x4x288xbf16, #tpu.memory_space<vmem>>, vector<1x1x4x288xbf16>
    %5 = vector.shape_cast %4 : vector<1x1x4x288xbf16> to vector<4x288xbf16>
    %cst_8 = arith.constant dense<0.000000e+00> : vector<4x128xf32>
    %6 = tpu.matmul %5, %0, %cst_8 {dimension_numbers = #tpu.dot_dimension_numbers<[1], [0], [0], [1], [0, 0, 1, 1], [], []>} : vector<4x288xbf16>, vector<288x128xbf16>, vector<4x128xf32> -> vector<4x128xf32>
    %7 = arith.maximumf %3, %6 : vector<4x128xf32>
    %c0_9 = arith.constant 0 : index
    %c2 = arith.constant 2 : index
    %c0_10 = arith.constant 0 : index
    %c0_11 = arith.constant 0 : index
    %8 = vector.load %arg1[%c0_9, %c2, %c0_10, %c0_11] : memref<1x4x4x288xbf16, #tpu.memory_space<vmem>>, vector<1x1x4x288xbf16>
    %9 = vector.shape_cast %8 : vector<1x1x4x288xbf16> to vector<4x288xbf16>
    %cst_12 = arith.constant dense<0.000000e+00> : vector<4x128xf32>
    %10 = tpu.matmul %9, %0, %cst_12 {dimension_numbers = #tpu.dot_dimension_numbers<[1], [0], [0], [1], [0, 0, 1, 1], [], []>} : vector<4x288xbf16>, vector<288x128xbf16>, vector<4x128xf32> -> vector<4x128xf32>
    %11 = arith.maximumf %7, %10 : vector<4x128xf32>
    %c0_13 = arith.constant 0 : index
    %c3 = arith.constant 3 : index
    %c0_14 = arith.constant 0 : index
    %c0_15 = arith.constant 0 : index
    %12 = vector.load %arg1[%c0_13, %c3, %c0_14, %c0_15] : memref<1x4x4x288xbf16, #tpu.memory_space<vmem>>, vector<1x1x4x288xbf16>
    %13 = vector.shape_cast %12 : vector<1x1x4x288xbf16> to vector<4x288xbf16>
    %cst_16 = arith.constant dense<0.000000e+00> : vector<4x128xf32>
    %14 = tpu.matmul %13, %0, %cst_16 {dimension_numbers = #tpu.dot_dimension_numbers<[1], [0], [0], [1], [0, 0, 1, 1], [], []>} : vector<4x288xbf16>, vector<288x128xbf16>, vector<4x128xf32> -> vector<4x128xf32>
    %15 = arith.maximumf %11, %14 : vector<4x128xf32>
    %c0_17 = arith.constant 0 : index
    %c0_18 = arith.constant 0 : index
    %16 = vector.load %arg3[%c0_17, %c0_18] : memref<1x128xf32, #tpu.memory_space<vmem>>, vector<1x128xf32>
    %17 = vector.broadcast %16 : vector<1x128xf32> to vector<4x128xf32>
    %18 = arith.addf %15, %17 : vector<4x128xf32>
    %cst_19 = arith.constant 0.000000e+00 : f32
    %19 = vector.broadcast %cst_19 : f32 to vector<4x128xf32>
    %20 = arith.maximumf %18, %19 : vector<4x128xf32>
    %c0_20 = arith.constant 0 : index
    %c0_21 = arith.constant 0 : index
    %c0_22 = arith.constant 0 : index
    %21 = vector.load %arg4[%c0_20, %c0_21, %c0_22] : memref<1x4x128xf32, #tpu.memory_space<vmem>>, vector<1x4x128xf32>
    %22 = vector.shape_cast %21 : vector<1x4x128xf32> to vector<4x128xf32>
    %23 = vector.shape_cast %20 : vector<4x128xf32> to vector<1x4x128xf32>
    tpu.vector_store %arg4[%c0_20, %c0_21, %c0_22], %23 {strides = array<i32>} : memref<1x4x128xf32, #tpu.memory_space<vmem>>, vector<1x4x128xf32>,
    return
  }
  func.func @transform_0(%arg0: i32) -> (i32, i32, i32, i32) {
    %c0_i32 = arith.constant 0 : i32
    %c0_i32_0 = arith.constant 0 : i32
    %c0_i32_1 = arith.constant 0 : i32
    %c0_i32_2 = arith.constant 0 : i32
    return %arg0, %c0_i32, %c0_i32_0, %c0_i32_1 : i32, i32, i32, i32
  }
  func.func @transform_1(%arg0: i32) -> (i32, i32) {
    %c0_i32 = arith.constant 0 : i32
    %c0_i32_0 = arith.constant 0 : i32
    %c0_i32_1 = arith.constant 0 : i32
    return %c0_i32, %c0_i32_0 : i32, i32
  }
  func.func @transform_2(%arg0: i32) -> (i32, i32) {
    %c0_i32 = arith.constant 0 : i32
    %c0_i32_0 = arith.constant 0 : i32
    %c0_i32_1 = arith.constant 0 : i32
    return %c0_i32, %c0_i32_0 : i32, i32
  }
  func.func @transform_3(%arg0: i32) -> (i32, i32, i32) {
    %c0_i32 = arith.constant 0 : i32
    %c0_i32_0 = arith.constant 0 : i32
    %c0_i32_1 = arith.constant 0 : i32
    return %arg0, %c0_i32, %c0_i32_0 : i32, i32, i32
  }
}

module attributes {stable_mosaic.version = 11 : i64} {
  func.func @_fc_head_kernel(%arg0: i32, %arg1: memref<2x128xbf16, #tpu.memory_space<vmem>>, %arg2: memref<128x256xbf16, #tpu.memory_space<vmem>>, %arg3: memref<1x256xf32, #tpu.memory_space<vmem>>, %arg4: memref<256x128xbf16, #tpu.memory_space<vmem>>, %arg5: memref<1x128xf32, #tpu.memory_space<vmem>>, %arg6: memref<2x128xf32, #tpu.memory_space<vmem>>, %arg7: memref<2x256xf32, #tpu.memory_space<vmem>>) attributes {dimension_semantics = [#tpu.dimension_semantics<arbitrary>], iteration_bounds = array<i64: 2>, scalar_prefetch = 0 : i64, scratch_operands = 1 : i64, tpu.core_type = #tpu.core_type<tc>, window_params = [{transform_indices = @transform_0, window_bounds = array<i64: 2, 128>}, {transform_indices = @transform_1, window_bounds = array<i64: 128, 256>}, {pipeline_mode = #tpu.pipeline_mode<synchronous>, transform_indices = @transform_2, window_bounds = array<i64: 1, 256>}, {pipeline_mode = #tpu.pipeline_mode<synchronous>, transform_indices = @transform_3, window_bounds = array<i64: 256, 128>}, {pipeline_mode = #tpu.pipeline_mode<synchronous>, transform_indices = @transform_4, window_bounds = array<i64: 1, 128>}, {pipeline_mode = #tpu.pipeline_mode<synchronous>, transform_indices = @transform_5, window_bounds = array<i64: 2, 128>}]} {
    %c0_i32 = arith.constant 0 : i32
    %0 = arith.cmpi eq, %arg0, %c0_i32 : i32
    %1 = arith.extui %0 : i1 to i32
    %c0_i32_0 = arith.constant 0 : i32
    %2 = arith.cmpi ne, %1, %c0_i32_0 : i32
    scf.if %2 {
      %cst_9 = arith.constant 0.000000e+00 : f32
      %12 = vector.broadcast %cst_9 : f32 to vector<2x256xf32>
      %c0_10 = arith.constant 0 : index
      %c0_11 = arith.constant 0 : index
      %13 = vector.load %arg7[%c0_10, %c0_11] : memref<2x256xf32, #tpu.memory_space<vmem>>, vector<2x256xf32>
      tpu.vector_store %arg7[%c0_10, %c0_11], %12 {strides = array<i32>} : memref<2x256xf32, #tpu.memory_space<vmem>>, vector<2x256xf32>,
    } else {
    }
    %c0 = arith.constant 0 : index
    %c0_1 = arith.constant 0 : index
    %3 = vector.load %arg7[%c0, %c0_1] : memref<2x256xf32, #tpu.memory_space<vmem>>, vector<2x256xf32>
    %c0_2 = arith.constant 0 : index
    %c0_3 = arith.constant 0 : index
    %4 = vector.load %arg1[%c0_2, %c0_3] : memref<2x128xbf16, #tpu.memory_space<vmem>>, vector<2x128xbf16>
    %c0_4 = arith.constant 0 : index
    %c0_5 = arith.constant 0 : index
    %5 = vector.load %arg2[%c0_4, %c0_5] : memref<128x256xbf16, #tpu.memory_space<vmem>>, vector<128x256xbf16>
    %cst = arith.constant dense<0.000000e+00> : vector<2x256xf32>
    %6 = tpu.matmul %4, %5, %cst {dimension_numbers = #tpu.dot_dimension_numbers<[1], [0], [0], [1], [0, 0, 1, 1], [], []>} : vector<2x128xbf16>, vector<128x256xbf16>, vector<2x256xf32> -> vector<2x256xf32>
    %7 = arith.addf %3, %6 : vector<2x256xf32>
    %c0_6 = arith.constant 0 : index
    %c0_7 = arith.constant 0 : index
    %8 = vector.load %arg7[%c0_6, %c0_7] : memref<2x256xf32, #tpu.memory_space<vmem>>, vector<2x256xf32>
    tpu.vector_store %arg7[%c0_6, %c0_7], %7 {strides = array<i32>} : memref<2x256xf32, #tpu.memory_space<vmem>>, vector<2x256xf32>,
    %c1_i32 = arith.constant 1 : i32
    %9 = arith.cmpi eq, %arg0, %c1_i32 : i32
    %10 = arith.extui %9 : i1 to i32
    %c0_i32_8 = arith.constant 0 : i32
    %11 = arith.cmpi ne, %10, %c0_i32_8 : i32
    scf.if %11 {
      %c0_9 = arith.constant 0 : index
      %c0_10 = arith.constant 0 : index
      %12 = vector.load %arg7[%c0_9, %c0_10] : memref<2x256xf32, #tpu.memory_space<vmem>>, vector<2x256xf32>
      %c0_11 = arith.constant 0 : index
      %c0_12 = arith.constant 0 : index
      %13 = vector.load %arg3[%c0_11, %c0_12] : memref<1x256xf32, #tpu.memory_space<vmem>>, vector<1x256xf32>
      %14 = vector.broadcast %13 : vector<1x256xf32> to vector<2x256xf32>
      %15 = arith.addf %12, %14 : vector<2x256xf32>
      %cst_13 = arith.constant 0.000000e+00 : f32
      %16 = vector.broadcast %cst_13 : f32 to vector<2x256xf32>
      %17 = arith.maximumf %15, %16 : vector<2x256xf32>
      %18 = arith.truncf %17 : vector<2x256xf32> to vector<2x256xbf16>
      %c0_14 = arith.constant 0 : index
      %c0_15 = arith.constant 0 : index
      %19 = vector.load %arg4[%c0_14, %c0_15] : memref<256x128xbf16, #tpu.memory_space<vmem>>, vector<256x128xbf16>
      %cst_16 = arith.constant dense<0.000000e+00> : vector<2x128xf32>
      %20 = tpu.matmul %18, %19, %cst_16 {dimension_numbers = #tpu.dot_dimension_numbers<[1], [0], [0], [1], [0, 0, 1, 1], [], []>} : vector<2x256xbf16>, vector<256x128xbf16>, vector<2x128xf32> -> vector<2x128xf32>
      %c0_17 = arith.constant 0 : index
      %c0_18 = arith.constant 0 : index
      %21 = vector.load %arg5[%c0_17, %c0_18] : memref<1x128xf32, #tpu.memory_space<vmem>>, vector<1x128xf32>
      %22 = vector.broadcast %21 : vector<1x128xf32> to vector<2x128xf32>
      %23 = arith.addf %20, %22 : vector<2x128xf32>
      %c0_19 = arith.constant 0 : index
      %c0_20 = arith.constant 0 : index
      %24 = vector.load %arg6[%c0_19, %c0_20] : memref<2x128xf32, #tpu.memory_space<vmem>>, vector<2x128xf32>
      tpu.vector_store %arg6[%c0_19, %c0_20], %23 {strides = array<i32>} : memref<2x128xf32, #tpu.memory_space<vmem>>, vector<2x128xf32>,
    } else {
    }
    return
  }
  func.func @transform_0(%arg0: i32) -> (i32, i32) {
    %c0_i32 = arith.constant 0 : i32
    %c0_i32_0 = arith.constant 0 : i32
    return %c0_i32, %arg0 : i32, i32
  }
  func.func @transform_1(%arg0: i32) -> (i32, i32) {
    %c0_i32 = arith.constant 0 : i32
    %c0_i32_0 = arith.constant 0 : i32
    return %arg0, %c0_i32 : i32, i32
  }
  func.func @transform_2(%arg0: i32) -> (i32, i32) {
    %c0_i32 = arith.constant 0 : i32
    %c0_i32_0 = arith.constant 0 : i32
    %c0_i32_1 = arith.constant 0 : i32
    return %c0_i32, %c0_i32_0 : i32, i32
  }
  func.func @transform_3(%arg0: i32) -> (i32, i32) {
    %c0_i32 = arith.constant 0 : i32
    %c0_i32_0 = arith.constant 0 : i32
    %c0_i32_1 = arith.constant 0 : i32
    return %c0_i32, %c0_i32_0 : i32, i32
  }
  func.func @transform_4(%arg0: i32) -> (i32, i32) {
    %c0_i32 = arith.constant 0 : i32
    %c0_i32_0 = arith.constant 0 : i32
    %c0_i32_1 = arith.constant 0 : i32
    return %c0_i32, %c0_i32_0 : i32, i32
  }
  func.func @transform_5(%arg0: i32) -> (i32, i32) {
    %c0_i32 = arith.constant 0 : i32
    %c0_i32_0 = arith.constant 0 : i32
    %c0_i32_1 = arith.constant 0 : i32
    return %c0_i32, %c0_i32_0 : i32, i32
  }
}

</mosaic_0001>

<llo_original>
// kernel: traffic_sign_net_forward.4
$region0: #{traffic_sign_net_forward.4}
  #allocation0 [shape = 'u32[]', space=smem, size = 0x4, offset = 0x4, fixed_abs, tag = 'smem constant byte address 0x4 - core index']
  #allocation1 [shape = 'u32[144,128]{1,0:T(1,128)}', space=vmem, size = 0x12000, scoped, tag = 'internal scratch']
  %s0 = inlined_call_operand.vmem [shape: bf16[2,4,64,27], index: 0, kind: input, shape index: {}]
  %s1 = inlined_call_operand.vmem [shape: bf16[27,128], index: 1, kind: input, shape index: {}]
  %s2 = inlined_call_operand.vmem [shape: f32[1,128], index: 2, kind: input, shape index: {}]
  %s3 = inlined_call_operand.vmem [shape: f32[2,64,128], index: 3, kind: output, shape index: {}]
  %s4 = sld [smem:[#allocation0]]
  $region45: #{traffic_sign_net_forward.4} parent=0
    _
  %s6 = ssub.s32 1, %s4
  %s7 = scalar_select 0, %s6, %s4
  loop: start=0, step=1, limit=4
  $region2: #{traffic_sign_net_forward.4} parent=0 // loop_pre_header
    _
  $region3: #{traffic_sign_net_forward.4} parent=0 // loop_header
    %s9 = sphi 0, %s13
    %p10 = scmp.ge.s32.totalorder %s9, 4
    %s19 = sphi 0, %s21
    %s22 = sphi 0, %s19
    %s23 = sphi 0, %s22
    %s39 = sphi 0, %s23
    %s43 = sphi 0, %s43
    %s45 = sphi 0, %s43
    %s46 = sphi 0, %s45
    %s60 = sphi 0, %s46
    %s64 = sphi 0, %s64
    %s66 = sphi 0, %s64
    %s67 = sphi 0, %s66
    %s81 = sphi 0, %s67
    %s87 = sphi 0, %s89
    %s90 = sphi 0, %s87
    %s91 = sphi 0, %s90
    %s107 = sphi 0, %s91
  $region4: #{traffic_sign_net_forward.4} parent=0 // loop_header_branch
    %12 = sbr.rel (%p10) target = $region8
  $region5: #{traffic_sign_net_forward.4} parent=0 // loop_body
    %s14 = ssub.s32 %s9, 1
    %s15 = ssub.s32 %s9, 2
    %s16 = sadd.s32 %s9, 1
    %s17 = ssub.s32 %s9, %s16
    %p18 = scmp.eq.s32.totalorder %s17, 0
    %s20 = sadd.s32 %s19, 1
    %s21 = scalar_select %p18, %s19, %s20
    %p24 = pneg %p18
    %p25 = scmp.eq.s32.totalorder %s9, 1
    %p26 = por %p24, %p25
    %p27 = scmp.ne.s32.totalorder %s19, %s22
    %p28 = scmp.eq.s32.totalorder %s9, 0
    %p29 = por %p27, %p28
    %p30 = scmp.ne.s32.totalorder %s19, %s22
    %p31 = scmp.eq.s32.totalorder %s14, 1
    %p32 = por %p30, %p31
    %p33 = scmp.ne.s32.totalorder %s22, %s23
    %p34 = scmp.eq.s32.totalorder %s14, 0
    %p35 = por %p33, %p34
    %p36 = scmp.ne.s32.totalorder %s22, %s23
    %p37 = scmp.eq.s32.totalorder %s15, 1
    %p38 = por %p36, %p37
    %p40 = scmp.ne.s32.totalorder %s23, %s39
    %p41 = scmp.eq.s32.totalorder %s15, 0
    %p42 = por %p40, %p41
    %s44 = sadd.s32 %s43, 1
    %p47 = scmp.eq.s32.totalorder %s9, 1
    %p48 = scmp.ne.s32.totalorder %s43, %s45
    %p49 = scmp.eq.s32.totalorder %s9, 0
    %p50 = por %p48, %p49
    %p51 = scmp.ne.s32.totalorder %s43, %s45
    %p52 = scmp.eq.s32.totalorder %s14, 1
    %p53 = por %p51, %p52
    %p54 = scmp.ne.s32.totalorder %s45, %s46
    %p55 = scmp.eq.s32.totalorder %s14, 0
    %p56 = por %p54, %p55
    %p57 = scmp.ne.s32.totalorder %s45, %s46
    %p58 = scmp.eq.s32.totalorder %s15, 1
    %p59 = por %p57, %p58
    %p61 = scmp.ne.s32.totalorder %s46, %s60
    %p62 = scmp.eq.s32.totalorder %s15, 0
    %p63 = por %p61, %p62
    %s65 = sadd.s32 %s64, 1
    %p68 = scmp.eq.s32.totalorder %s9, 1
    %p69 = scmp.ne.s32.totalorder %s64, %s66
    %p70 = scmp.eq.s32.totalorder %s9, 0
    %p71 = por %p69, %p70
    %p72 = scmp.ne.s32.totalorder %s64, %s66
    %p73 = scmp.eq.s32.totalorder %s14, 1
    %p74 = por %p72, %p73
    %p75 = scmp.ne.s32.totalorder %s66, %s67
    %p76 = scmp.eq.s32.totalorder %s14, 0
    %p77 = por %p75, %p76
    %p78 = scmp.ne.s32.totalorder %s66, %s67
    %p79 = scmp.eq.s32.totalorder %s15, 1
    %p80 = por %p78, %p79
    %p82 = scmp.ne.s32.totalorder %s67, %s81
    %p83 = scmp.eq.s32.totalorder %s15, 0
    %p84 = por %p82, %p83
    %s85 = ssub.s32 %s9, %s16
    %p86 = scmp.eq.s32.totalorder %s85, 0
    %s88 = sadd.s32 %s87, 1
    %s89 = scalar_select %p86, %s87, %s88
    %p92 = pneg %p86
    %p93 = scmp.eq.s32.totalorder %s9, 1
    %p94 = por %p92, %p93
    %p95 = scmp.ne.s32.totalorder %s87, %s90
    %p96 = scmp.eq.s32.totalorder %s9, 0
    %p97 = por %p95, %p96
    %p98 = scmp.ne.s32.totalorder %s87, %s90
    %p99 = scmp.eq.s32.totalorder %s14, 1
    %p100 = por %p98, %p99
    %p101 = scmp.ne.s32.totalorder %s90, %s91
    %p102 = scmp.eq.s32.totalorder %s14, 0
    %p103 = por %p101, %p102
    %p104 = scmp.ne.s32.totalorder %s90, %s91
    %p105 = scmp.eq.s32.totalorder %s15, 1
    %p106 = por %p104, %p105
    %p108 = scmp.ne.s32.totalorder %s91, %s107
    %p109 = scmp.eq.s32.totalorder %s15, 0
    %p110 = por %p108, %p109
    %p111 = scmp.le.s32.totalorder 1, %s9
    %p112 = scmp.lt.s32.totalorder %s9, 3
    %p113 = pnand %p111, %p112
    %p114 = pneg %p113
    // Predicated region
    $region9: #{traffic_sign_net_forward.4} parent=5 // pred_check
      _
    $region10: #{traffic_sign_net_forward.4} parent=5 // pred_check_branch
      %116 = sbr.rel (%p113) target = $region12
    $region11: #{traffic_sign_net_forward.4} parent=5 // pred_region
      %s117 = ssub.s32 %s9, 1
      // Predicated region
      $region13: #{traffic_sign_net_forward.4} parent=11 // pred_check
        %p118 = pneg %p56
      $region14: #{traffic_sign_net_forward.4} parent=11 // pred_check_branch
        %120 = sbr.rel (%p118) target = $region16
      $region15: #{traffic_sign_net_forward.4} parent=11 // pred_region
        _
      $region16: #{traffic_sign_net_forward.4} parent=11 // pred_fallthru
        _
      // Predicated region
      $region17: #{traffic_sign_net_forward.4} parent=11 // pred_check
        %p121 = pneg %p77
      $region18: #{traffic_sign_net_forward.4} parent=11 // pred_check_branch
        %123 = sbr.rel (%p121) target = $region20
      $region19: #{traffic_sign_net_forward.4} parent=11 // pred_region
        _
      $region20: #{traffic_sign_net_forward.4} parent=11 // pred_fallthru
        _
    $region12: #{traffic_sign_net_forward.4} parent=5 // pred_fallthru
      _
    %p124 = scmp.lt.s32.totalorder %s9, 2
    // Predicated region
    $region21: #{traffic_sign_net_forward.4} parent=5 // pred_check
      %p125 = pneg %p124
    $region22: #{traffic_sign_net_forward.4} parent=5 // pred_check_branch
      %127 = sbr.rel (%p125) target = $region24
    $region23: #{traffic_sign_net_forward.4} parent=5 // pred_region
      // Predicated region
      $region25: #{traffic_sign_net_forward.4} parent=23 // pred_check
        %p128 = pneg %p29
      $region26: #{traffic_sign_net_forward.4} parent=23 // pred_check_branch
        %130 = sbr.rel (%p128) target = $region28
      $region27: #{traffic_sign_net_forward.4} parent=23 // pred_region
        %p131 = scmp.lt.s32.totalorder %s9, 1
        %s132 = scalar_select %p131, %s9, 1
        %s133 = smul.addr %s132, 32
        %s134 = smul.addr %s133, 4
        %s135 = scalar_lea.vmem %s0, %s134
      $region28: #{traffic_sign_net_forward.4} parent=23 // pred_fallthru
        _
    $region24: #{traffic_sign_net_forward.4} parent=5 // pred_fallthru
      _
    %p136 = scmp.le.s32.totalorder 1, %s9
    %p137 = scmp.lt.s32.totalorder %s9, 3
    %p138 = pnand %p136, %p137
    %p139 = pneg %p138
    // Predicated region
    $region29: #{traffic_sign_net_forward.4} parent=5 // pred_check
      _
    $region30: #{traffic_sign_net_forward.4} parent=5 // pred_check_branch
      %141 = sbr.rel (%p138) target = $region32
    $region31: #{traffic_sign_net_forward.4} parent=5 // pred_region
      %s142 = ssub.s32 %s9, 1
      %p143 = scmp.lt.s32.totalorder %s14, 1
      %s144 = scalar_select %p143, %s14, 1
      %s145 = smul.addr %s144, 32
      %s146 = smul.addr %s145, 4
      %s147 = scalar_lea.vmem %s0, %s146
      %p148 = pneg %p35
      %p149 = pneg %p32
      %p150 = pneg %p56
      %p151 = pneg %p53
      %p152 = pneg %p77
      %p153 = pneg %p74
      %p154 = pneg %p103
      %p155 = pneg %p100
      %p156 = scmp.lt.s32.totalorder %s14, 1
      %s157 = scalar_select %p156, %s14, 1
      %s158 = smul.addr %s157, 8
      %s159 = smul.addr %s158, 8
      %s160 = scalar_lea.vmem %s3, %s159
      %p161 = scmp.lt.s32.totalorder %s14, 1
      %s162 = scalar_select %p161, %s14, 1
      %s163 = smul.addr %s162, 32
      %s164 = smul.addr %s163, 4
      %s165 = scalar_lea.vmem %s0, %s164
      %p166 = scmp.lt.s32.totalorder %s14, 1
      %s167 = scalar_select %p166, %s14, 1
      %s168 = smul.addr %s167, 8
      %s169 = smul.addr %s168, 8
      %s170 = scalar_lea.vmem %s3, %s169
      %v172 = vld [vmem:[%s1] sm:$0xf]
      %v173 = vld [vmem:[%s1 + $0x4] sm:$0xf]
      %v174 = vld [vmem:[%s1 + $0x8] sm:$0xf]
      %v175 = vld [vmem:[%s1 + $0xc] sm:$0x3]
      %v176 = vld [vmem:[%s165] sm:$0xf]
      %v177 = vld [vmem:[%s165 + $0x4] sm:$0xf]
      %v178 = vld [vmem:[%s165 + $0x8] sm:$0xf]
      %v179 = vld [vmem:[%s165 + $0xc] sm:$0xf]
      %v180 = vld [vmem:[%s165 + $0x10] sm:$0xf]
      %v181 = vld [vmem:[%s165 + $0x14] sm:$0xf]
      %v182 = vld [vmem:[%s165 + $0x18] sm:$0xf]
      %v183 = vld [vmem:[%s165 + $0x1c] sm:$0xf]
      %v192 = vunpack.c.l.b16 %v176
      %v193 = vunpack.c.l.b16 %v177
      %v194 = vunpack.c.l.b16 %v178
      %v195 = vunpack.c.l.b16 %v179
      %v196 = vunpack.c.l.b16 %v180
      %v197 = vunpack.c.l.b16 %v181
      %v198 = vunpack.c.l.b16 %v182
      %v199 = vunpack.c.l.b16 %v183
      %v200 = vpack.c.b16 %v193, %v192
      %v201 = vpack.c.b16 %v195, %v194
      %v202 = vpack.c.b16 %v197, %v196
      %v203 = vpack.c.b16 %v199, %v198
      %v208 = vunpack.c.l.b16 %v172
      %v209 = vunpack.c.l.b16 %v173
      %v210 = vunpack.c.l.b16 %v174
      %v211 = vunpack.c.l.b16 %v175
      %v212 = vpack.c.b16 %v209, %v208
      %v213 = vpack.c.b16 %v211, %v210
      %vm215 = vcmask 220160
      %v217 = vsel %vm215, %v200, 0
      %v220 = vsel %vm215, %v201, 0
      %v223 = vsel %vm215, %v202, 0
      %v226 = vsel %vm215, %v203, 0
      %vm228 = vcmask 1044480
      %vm229 = vcmask 1045504
      %v230 = vsel %vm228, 4294967295, 65535
      %v231 = vsel %vm229, %v230, 0
      %v233 = vand.u32 %v213, %v231
      %235 = vmatprep.subr.bf16.mxu0 0
      %236 = vmatpush1.bf16.msra.mxu0 %v212
      %237 = vmatprep.subr.bf16.mxu0 0
      %238 = vmatpush1.bf16.msra.mxu0 %v233
      %239 = vmatprep.subr.bf16.mxu0 0
      %240 = vmatpush1.bf16.msra.mxu0 0
      %241 = vmatprep.subr.bf16.mxu0 0
      %242 = vmatpush1.bf16.msra.mxu0 0
      %243 = vmatprep.subr.bf16.mxu0 0
      %244 = vmatpush1.bf16.msra.mxu0 0
      %245 = vmatprep.subr.bf16.mxu0 0
      %246 = vmatpush1.bf16.msra.mxu0 0
      %247 = vmatprep.subr.bf16.mxu0 0
      %248 = vmatpush1.bf16.msra.mxu0 0
      %249 = vmatprep.subr.bf16.mxu0 0
      %250 = vmatpush1.bf16.msra.mxu0 0
      %251 = vmatprep.subr.bf16.mxu0 0
      %252 = vmatpush1.bf16.msra.mxu0 0
      %253 = vmatprep.subr.bf16.mxu0 0
      %254 = vmatpush1.bf16.msra.mxu0 0
      %255 = vmatprep.subr.bf16.mxu0 0
      %256 = vmatpush1.bf16.msra.mxu0 0
      %257 = vmatprep.subr.bf16.mxu0 0
      %258 = vmatpush1.bf16.msra.mxu0 0
      %259 = vmatprep.subr.bf16.mxu0 0
      %260 = vmatpush1.bf16.msra.mxu0 0
      %261 = vmatprep.subr.bf16.mxu0 0
      %262 = vmatpush1.bf16.msra.mxu0 0
      %263 = vmatprep.subr.bf16.mxu0 0
      %264 = vmatpush1.bf16.msra.mxu0 0
      %265 = vmatprep.subr.bf16.mxu0 0
      %266 = vmatpush1.bf16.msra.mxu0 0
      %267 = vmatprep.mubr.bf16.mxu0 0
      %268 = vmatmul.mubr.bf16.gmra.mrb[0].mxu0 %v217
      %v269 = vpop.f32.mrb[0].mxu0
      %v270 = vadd.f32 0.0, %v269
      %v271 = vpop.f32.mrb[0].mxu0
      %v272 = vpop.f32.mrb[0].mxu0
      %v273 = vadd.f32 0.0, %v272
      %v274 = vpop.f32.mrb[0].mxu0
      %275 = vmatprep.mubr.bf16.mxu0 0
      %276 = vmatmul.mubr.bf16.gmra.mrb[0].mxu0 %v220
      %v277 = vpop.f32.mrb[0].mxu0
      %v278 = vadd.f32 0.0, %v277
      %v279 = vpop.f32.mrb[0].mxu0
      %v280 = vpop.f32.mrb[0].mxu0
      %v281 = vadd.f32 0.0, %v280
      %v282 = vpop.f32.mrb[0].mxu0
      %283 = vmatprep.mubr.bf16.mxu0 0
      %284 = vmatmul.mubr.bf16.gmra.mrb[0].mxu0 %v223
      %v285 = vpop.f32.mrb[0].mxu0
      %v286 = vadd.f32 0.0, %v285
      %v287 = vpop.f32.mrb[0].mxu0
      %v288 = vpop.f32.mrb[0].mxu0
      %v289 = vadd.f32 0.0, %v288
      %v290 = vpop.f32.mrb[0].mxu0
      %291 = vmatprep.mubr.bf16.mxu0 0
      %292 = vmatmul.mubr.bf16.gmra.mrb[0].mxu0 %v226
      %v293 = vpop.f32.mrb[0].mxu0
      %v294 = vadd.f32 0.0, %v293
      %v295 = vpop.f32.mrb[0].mxu0
      %v296 = vpop.f32.mrb[0].mxu0
      %v297 = vadd.f32 0.0, %v296
      %v298 = vpop.f32.mrb[0].mxu0
      %299 = vdwg.mxu0
      %s300 = scalar_lea.vmem %s165, 32
      %v301 = vld [vmem:[%s300] sm:$0xf]
      %v302 = vld [vmem:[%s300 + $0x4] sm:$0xf]
      %v303 = vld [vmem:[%s300 + $0x8] sm:$0xf]
      %v304 = vld [vmem:[%s300 + $0xc] sm:$0xf]
      %v305 = vld [vmem:[%s300 + $0x10] sm:$0xf]
      %v306 = vld [vmem:[%s300 + $0x14] sm:$0xf]
      %v307 = vld [vmem:[%s300 + $0x18] sm:$0xf]
      %v308 = vld [vmem:[%s300 + $0x1c] sm:$0xf]
      %v317 = vunpack.c.l.b16 %v301
      %v318 = vunpack.c.l.b16 %v302
      %v319 = vunpack.c.l.b16 %v303
      %v320 = vunpack.c.l.b16 %v304
      %v321 = vunpack.c.l.b16 %v305
      %v322 = vunpack.c.l.b16 %v306
      %v323 = vunpack.c.l.b16 %v307
      %v324 = vunpack.c.l.b16 %v308
      %v325 = vpack.c.b16 %v318, %v317
      %v326 = vpack.c.b16 %v320, %v319
      %v327 = vpack.c.b16 %v322, %v321
      %v328 = vpack.c.b16 %v324, %v323
      %v330 = vsel %vm215, %v325, 0
      %v333 = vsel %vm215, %v326, 0
      %v336 = vsel %vm215, %v327, 0
      %v339 = vsel %vm215, %v328, 0
      %341 = vmatprep.subr.bf16.mxu0 0
      %342 = vmatpush1.bf16.msra.mxu0 %v212
      %343 = vmatprep.subr.bf16.mxu0 0
      %344 = vmatpush1.bf16.msra.mxu0 %v233
      %345 = vmatprep.subr.bf16.mxu0 0
      %346 = vmatpush1.bf16.msra.mxu0 0
      %347 = vmatprep.subr.bf16.mxu0 0
      %348 = vmatpush1.bf16.msra.mxu0 0
      %349 = vmatprep.subr.bf16.mxu0 0
      %350 = vmatpush1.bf16.msra.mxu0 0
      %351 = vmatprep.subr.bf16.mxu0 0
      %352 = vmatpush1.bf16.msra.mxu0 0
      %353 = vmatprep.subr.bf16.mxu0 0
      %354 = vmatpush1.bf16.msra.mxu0 0
      %355 = vmatprep.subr.bf16.mxu0 0
      %356 = vmatpush1.bf16.msra.mxu0 0
      %357 = vmatprep.subr.bf16.mxu0 0
      %358 = vmatpush1.bf16.msra.mxu0 0
      %359 = vmatprep.subr.bf16.mxu0 0
      %360 = vmatpush1.bf16.msra.mxu0 0
      %361 = vmatprep.subr.bf16.mxu0 0
      %362 = vmatpush1.bf16.msra.mxu0 0
      %363 = vmatprep.subr.bf16.mxu0 0
      %364 = vmatpush1.bf16.msra.mxu0 0
      %365 = vmatprep.subr.bf16.mxu0 0
      %366 = vmatpush1.bf16.msra.mxu0 0
      %367 = vmatprep.subr.bf16.mxu0 0
      %368 = vmatpush1.bf16.msra.mxu0 0
      %369 = vmatprep.subr.bf16.mxu0 0
      %370 = vmatpush1.bf16.msra.mxu0 0
      %371 = vmatprep.subr.bf16.mxu0 0
      %372 = vmatpush1.bf16.msra.mxu0 0
      %373 = vmatprep.mubr.bf16.mxu0 0
      %374 = vmatmul.mubr.bf16.gmra.mrb[0].mxu0 %v330
      %v375 = vpop.f32.mrb[0].mxu0
      %v376 = vadd.f32 0.0, %v375
      %v377 = vpop.f32.mrb[0].mxu0
      %v378 = vpop.f32.mrb[0].mxu0
      %v379 = vadd.f32 0.0, %v378
      %v380 = vpop.f32.mrb[0].mxu0
      %381 = vmatprep.mubr.bf16.mxu0 0
      %382 = vmatmul.mubr.bf16.gmra.mrb[0].mxu0 %v333
      %v383 = vpop.f32.mrb[0].mxu0
      %v384 = vadd.f32 0.0, %v383
      %v385 = vpop.f32.mrb[0].mxu0
      %v386 = vpop.f32.mrb[0].mxu0
      %v387 = vadd.f32 0.0, %v386
      %v388 = vpop.f32.mrb[0].mxu0
      %389 = vmatprep.mubr.bf16.mxu0 0
      %390 = vmatmul.mubr.bf16.gmra.mrb[0].mxu0 %v336
      %v391 = vpop.f32.mrb[0].mxu0
      %v392 = vadd.f32 0.0, %v391
      %v393 = vpop.f32.mrb[0].mxu0
      %v394 = vpop.f32.mrb[0].mxu0
      %v395 = vadd.f32 0.0, %v394
      %v396 = vpop.f32.mrb[0].mxu0
      %397 = vmatprep.mubr.bf16.mxu0 0
      %398 = vmatmul.mubr.bf16.gmra.mrb[0].mxu0 %v339
      %v399 = vpop.f32.mrb[0].mxu0
      %v400 = vadd.f32 0.0, %v399
      %v401 = vpop.f32.mrb[0].mxu0
      %v402 = vpop.f32.mrb[0].mxu0
      %v403 = vadd.f32 0.0, %v402
      %v404 = vpop.f32.mrb[0].mxu0
      %405 = vdwg.mxu0
      %v406 = vmax.f32 %v270, %v376
      %v407 = vmax.f32 %v273, %v379
      %v408 = vmax.f32 %v278, %v384
      %v409 = vmax.f32 %v281, %v387
      %v410 = vmax.f32 %v286, %v392
      %v411 = vmax.f32 %v289, %v395
      %v412 = vmax.f32 %v294, %v400
      %v413 = vmax.f32 %v297, %v403
      %s414 = scalar_lea.vmem %s165, 64
      %v415 = vld [vmem:[%s414] sm:$0xf]
      %v416 = vld [vmem:[%s414 + $0x4] sm:$0xf]
      %v417 = vld [vmem:[%s414 + $0x8] sm:$0xf]
      %v418 = vld [vmem:[%s414 + $0xc] sm:$0xf]
      %v419 = vld [vmem:[%s414 + $0x10] sm:$0xf]
      %v420 = vld [vmem:[%s414 + $0x14] sm:$0xf]
      %v421 = vld [vmem:[%s414 + $0x18] sm:$0xf]
      %v422 = vld [vmem:[%s414 + $0x1c] sm:$0xf]
      %v431 = vunpack.c.l.b16 %v415
      %v432 = vunpack.c.l.b16 %v416
      %v433 = vunpack.c.l.b16 %v417
      %v434 = vunpack.c.l.b16 %v418
      %v435 = vunpack.c.l.b16 %v419
      %v436 = vunpack.c.l.b16 %v420
      %v437 = vunpack.c.l.b16 %v421
      %v438 = vunpack.c.l.b16 %v422
      %v439 = vpack.c.b16 %v432, %v431
      %v440 = vpack.c.b16 %v434, %v433
      %v441 = vpack.c.b16 %v436, %v435
      %v442 = vpack.c.b16 %v438, %v437
      %v444 = vsel %vm215, %v439, 0
      %v447 = vsel %vm215, %v440, 0
      %v450 = vsel %vm215, %v441, 0
      %v453 = vsel %vm215, %v442, 0
      %455 = vmatprep.subr.bf16.mxu0 0
      %456 = vmatpush1.bf16.msra.mxu0 %v212
      %457 = vmatprep.subr.bf16.mxu0 0
      %458 = vmatpush1.bf16.msra.mxu0 %v233
      %459 = vmatprep.subr.bf16.mxu0 0
      %460 = vmatpush1.bf16.msra.mxu0 0
      %461 = vmatprep.subr.bf16.mxu0 0
      %462 = vmatpush1.bf16.msra.mxu0 0
      %463 = vmatprep.subr.bf16.mxu0 0
      %464 = vmatpush1.bf16.msra.mxu0 0
      %465 = vmatprep.subr.bf16.mxu0 0
      %466 = vmatpush1.bf16.msra.mxu0 0
      %467 = vmatprep.subr.bf16.mxu0 0
      %468 = vmatpush1.bf16.msra.mxu0 0
      %469 = vmatprep.subr.bf16.mxu0 0
      %470 = vmatpush1.bf16.msra.mxu0 0
      %471 = vmatprep.subr.bf16.mxu0 0
      %472 = vmatpush1.bf16.msra.mxu0 0
      %473 = vmatprep.subr.bf16.mxu0 0
      %474 = vmatpush1.bf16.msra.mxu0 0
      %475 = vmatprep.subr.bf16.mxu0 0
      %476 = vmatpush1.bf16.msra.mxu0 0
      %477 = vmatprep.subr.bf16.mxu0 0
      %478 = vmatpush1.bf16.msra.mxu0 0
      %479 = vmatprep.subr.bf16.mxu0 0
      %480 = vmatpush1.bf16.msra.mxu0 0
      %481 = vmatprep.subr.bf16.mxu0 0
      %482 = vmatpush1.bf16.msra.mxu0 0
      %483 = vmatprep.subr.bf16.mxu0 0
      %484 = vmatpush1.bf16.msra.mxu0 0
      %485 = vmatprep.subr.bf16.mxu0 0
      %486 = vmatpush1.bf16.msra.mxu0 0
      %487 = vmatprep.mubr.bf16.mxu0 0
      %488 = vmatmul.mubr.bf16.gmra.mrb[0].mxu0 %v444
      %v489 = vpop.f32.mrb[0].mxu0
      %v490 = vadd.f32 0.0, %v489
      %v491 = vpop.f32.mrb[0].mxu0
      %v492 = vpop.f32.mrb[0].mxu0
      %v493 = vadd.f32 0.0, %v492
      %v494 = vpop.f32.mrb[0].mxu0
      %495 = vmatprep.mubr.bf16.mxu0 0
      %496 = vmatmul.mubr.bf16.gmra.mrb[0].mxu0 %v447
      %v497 = vpop.f32.mrb[0].mxu0
      %v498 = vadd.f32 0.0, %v497
      %v499 = vpop.f32.mrb[0].mxu0
      %v500 = vpop.f32.mrb[0].mxu0
      %v501 = vadd.f32 0.0, %v500
      %v502 = vpop.f32.mrb[0].mxu0
      %503 = vmatprep.mubr.bf16.mxu0 0
      %504 = vmatmul.mubr.bf16.gmra.mrb[0].mxu0 %v450
      %v505 = vpop.f32.mrb[0].mxu0
      %v506 = vadd.f32 0.0, %v505
      %v507 = vpop.f32.mrb[0].mxu0
      %v508 = vpop.f32.mrb[0].mxu0
      %v509 = vadd.f32 0.0, %v508
      %v510 = vpop.f32.mrb[0].mxu0
      %511 = vmatprep.mubr.bf16.mxu0 0
      %512 = vmatmul.mubr.bf16.gmra.mrb[0].mxu0 %v453
      %v513 = vpop.f32.mrb[0].mxu0
      %v514 = vadd.f32 0.0, %v513
      %v515 = vpop.f32.mrb[0].mxu0
      %v516 = vpop.f32.mrb[0].mxu0
      %v517 = vadd.f32 0.0, %v516
      %v518 = vpop.f32.mrb[0].mxu0
      %519 = vdwg.mxu0
      %v520 = vmax.f32 %v406, %v490
      %v521 = vmax.f32 %v407, %v493
      %v522 = vmax.f32 %v408, %v498
      %v523 = vmax.f32 %v409, %v501
      %v524 = vmax.f32 %v410, %v506
      %v525 = vmax.f32 %v411, %v509
      %v526 = vmax.f32 %v412, %v514
      %v527 = vmax.f32 %v413, %v517
      %s528 = scalar_lea.vmem %s165, 96
      %v529 = vld [vmem:[%s528] sm:$0xf]
      %v530 = vld [vmem:[%s528 + $0x4] sm:$0xf]
      %v531 = vld [vmem:[%s528 + $0x8] sm:$0xf]
      %v532 = vld [vmem:[%s528 + $0xc] sm:$0xf]
      %v533 = vld [vmem:[%s528 + $0x10] sm:$0xf]
      %v534 = vld [vmem:[%s528 + $0x14] sm:$0xf]
      %v535 = vld [vmem:[%s528 + $0x18] sm:$0xf]
      %v536 = vld [vmem:[%s528 + $0x1c] sm:$0xf]
      %v545 = vunpack.c.l.b16 %v529
      %v546 = vunpack.c.l.b16 %v530
      %v547 = vunpack.c.l.b16 %v531
      %v548 = vunpack.c.l.b16 %v532
      %v549 = vunpack.c.l.b16 %v533
      %v550 = vunpack.c.l.b16 %v534
      %v551 = vunpack.c.l.b16 %v535
      %v552 = vunpack.c.l.b16 %v536
      %v553 = vpack.c.b16 %v546, %v545
      %v554 = vpack.c.b16 %v548, %v547
      %v555 = vpack.c.b16 %v550, %v549
      %v556 = vpack.c.b16 %v552, %v551
      %v558 = vsel %vm215, %v553, 0
      %v561 = vsel %vm215, %v554, 0
      %v564 = vsel %vm215, %v555, 0
      %v567 = vsel %vm215, %v556, 0
      %569 = vmatprep.subr.bf16.mxu0 0
      %570 = vmatpush1.bf16.msra.mxu0 %v212
      %571 = vmatprep.subr.bf16.mxu0 0
      %572 = vmatpush1.bf16.msra.mxu0 %v233
      %573 = vmatprep.subr.bf16.mxu0 0
      %574 = vmatpush1.bf16.msra.mxu0 0
      %575 = vmatprep.subr.bf16.mxu0 0
      %576 = vmatpush1.bf16.msra.mxu0 0
      %577 = vmatprep.subr.bf16.mxu0 0
      %578 = vmatpush1.bf16.msra.mxu0 0
      %579 = vmatprep.subr.bf16.mxu0 0
      %580 = vmatpush1.bf16.msra.mxu0 0
      %581 = vmatprep.subr.bf16.mxu0 0
      %582 = vmatpush1.bf16.msra.mxu0 0
      %583 = vmatprep.subr.bf16.mxu0 0
      %584 = vmatpush1.bf16.msra.mxu0 0
      %585 = vmatprep.subr.bf16.mxu0 0
      %586 = vmatpush1.bf16.msra.mxu0 0
      %587 = vmatprep.subr.bf16.mxu0 0
      %588 = vmatpush1.bf16.msra.mxu0 0
      %589 = vmatprep.subr.bf16.mxu0 0
      %590 = vmatpush1.bf16.msra.mxu0 0
      %591 = vmatprep.subr.bf16.mxu0 0
      %592 = vmatpush1.bf16.msra.mxu0 0
      %593 = vmatprep.subr.bf16.mxu0 0
      %594 = vmatpush1.bf16.msra.mxu0 0
      %595 = vmatprep.subr.bf16.mxu0 0
      %596 = vmatpush1.bf16.msra.mxu0 0
      %597 = vmatprep.subr.bf16.mxu0 0
      %598 = vmatpush1.bf16.msra.mxu0 0
      %599 = vmatprep.subr.bf16.mxu0 0
      %600 = vmatpush1.bf16.msra.mxu0 0
      %601 = vmatprep.mubr.bf16.mxu0 0
      %602 = vmatmul.mubr.bf16.gmra.mrb[0].mxu0 %v558
      %v603 = vpop.f32.mrb[0].mxu0
      %v604 = vadd.f32 0.0, %v603
      %v605 = vpop.f32.mrb[0].mxu0
      %v606 = vpop.f32.mrb[0].mxu0
      %v607 = vadd.f32 0.0, %v606
      %v608 = vpop.f32.mrb[0].mxu0
      %609 = vmatprep.mubr.bf16.mxu0 0
      %610 = vmatmul.mubr.bf16.gmra.mrb[0].mxu0 %v561
      %v611 = vpop.f32.mrb[0].mxu0
      %v612 = vadd.f32 0.0, %v611
      %v613 = vpop.f32.mrb[0].mxu0
      %v614 = vpop.f32.mrb[0].mxu0
      %v615 = vadd.f32 0.0, %v614
      %v616 = vpop.f32.mrb[0].mxu0
      %617 = vmatprep.mubr.bf16.mxu0 0
      %618 = vmatmul.mubr.bf16.gmra.mrb[0].mxu0 %v564
      %v619 = vpop.f32.mrb[0].mxu0
      %v620 = vadd.f32 0.0, %v619
      %v621 = vpop.f32.mrb[0].mxu0
      %v622 = vpop.f32.mrb[0].mxu0
      %v623 = vadd.f32 0.0, %v622
      %v624 = vpop.f32.mrb[0].mxu0
      %625 = vmatprep.mubr.bf16.mxu0 0
      %626 = vmatmul.mubr.bf16.gmra.mrb[0].mxu0 %v567
      %v627 = vpop.f32.mrb[0].mxu0
      %v628 = vadd.f32 0.0, %v627
      %v629 = vpop.f32.mrb[0].mxu0
      %v630 = vpop.f32.mrb[0].mxu0
      %v631 = vadd.f32 0.0, %v630
      %v632 = vpop.f32.mrb[0].mxu0
      %633 = vdwg.mxu0
      %v634 = vmax.f32 %v520, %v604
      %v635 = vmax.f32 %v521, %v607
      %v636 = vmax.f32 %v522, %v612
      %v637 = vmax.f32 %v523, %v615
      %v638 = vmax.f32 %v524, %v620
      %v639 = vmax.f32 %v525, %v623
      %v640 = vmax.f32 %v526, %v628
      %v641 = vmax.f32 %v527, %v631
      %v642 = vld [vmem:[%s2] sm:$0x1]
      %v644 = vlaneseq
      %v645 = vshrl.u32 %v644, 7
      %v646 = vsub.s32 0, %v645
      %v647 = vrot.slane %v642, %v646
      %v649 = vadd.f32 %v634, %v647
      %v650 = vadd.f32 %v635, %v647
      %v651 = vadd.f32 %v636, %v647
      %v652 = vadd.f32 %v637, %v647
      %v653 = vadd.f32 %v638, %v647
      %v654 = vadd.f32 %v639, %v647
      %v655 = vadd.f32 %v640, %v647
      %v656 = vadd.f32 %v641, %v647
      %v657 = vmax.f32 %v649, 0.0
      %v658 = vmax.f32 %v650, 0.0
      %v659 = vmax.f32 %v651, 0.0
      %v660 = vmax.f32 %v652, 0.0
      %v661 = vmax.f32 %v653, 0.0
      %v662 = vmax.f32 %v654, 0.0
      %v663 = vmax.f32 %v655, 0.0
      %v664 = vmax.f32 %v656, 0.0
      %665 = vst [vmem:[%s170] sm:$0xff] %v657
      %666 = vst [vmem:[%s170 + $0x8] sm:$0xff] %v658
      %667 = vst [vmem:[%s170 + $0x10] sm:$0xff] %v659
      %668 = vst [vmem:[%s170 + $0x18] sm:$0xff] %v660
      %669 = vst [vmem:[%s170 + $0x20] sm:$0xff] %v661
      %670 = vst [vmem:[%s170 + $0x28] sm:$0xff] %v662
      %671 = vst [vmem:[%s170 + $0x30] sm:$0xff] %v663
      %672 = vst [vmem:[%s170 + $0x38] sm:$0xff] %v664
      %p673 = scmp.lt.s32.totalorder %s14, 1
      %s674 = scalar_select %p673, %s14, 1
      %s675 = smul.addr %s674, 8
      %s676 = smul.addr %s675, 8
      %s677 = scalar_lea.vmem %s3, %s676
      // Predicated region
      $region33: #{traffic_sign_net_forward.4} parent=31 // pred_check
        %p678 = pneg %p100
      $region34: #{traffic_sign_net_forward.4} parent=31 // pred_check_branch
        %680 = sbr.rel (%p678) target = $region36
      $region35: #{traffic_sign_net_forward.4} parent=31 // pred_region
        _
      $region36: #{traffic_sign_net_forward.4} parent=31 // pred_fallthru
        _
    $region32: #{traffic_sign_net_forward.4} parent=5 // pred_fallthru
      _
    %p681 = scmp.le.s32.totalorder 2, %s9
    // Predicated region
    $region37: #{traffic_sign_net_forward.4} parent=5 // pred_check
      %p682 = pneg %p681
    $region38: #{traffic_sign_net_forward.4} parent=5 // pred_check_branch
      %684 = sbr.rel (%p682) target = $region40
    $region39: #{traffic_sign_net_forward.4} parent=5 // pred_region
      %s685 = ssub.s32 %s9, 2
      // Predicated region
      $region41: #{traffic_sign_net_forward.4} parent=39 // pred_check
        %p686 = pneg %p106
      $region42: #{traffic_sign_net_forward.4} parent=39 // pred_check_branch
        %688 = sbr.rel (%p686) target = $region44
      $region43: #{traffic_sign_net_forward.4} parent=39 // pred_region
        %p689 = scmp.lt.s32.totalorder %s15, 1
        %s690 = scalar_select %p689, %s15, 1
        %s691 = smul.addr %s690, 8
        %s692 = smul.addr %s691, 8
        %s693 = scalar_lea.vmem %s3, %s692
      $region44: #{traffic_sign_net_forward.4} parent=39 // pred_fallthru
        _
    $region40: #{traffic_sign_net_forward.4} parent=5 // pred_fallthru
      _
  $region6: #{traffic_sign_net_forward.4} parent=0 // loop_footer
    %s13 = sadd.s32 1, %s9
  $region7: #{traffic_sign_net_forward.4} parent=0 // loop_footer_branch
    %8 = sbr.rel target = $region3
  $region8: #{traffic_sign_net_forward.4} parent=0 // loop_exit
    _

// kernel: traffic_sign_net_forward.5
$region0: #{traffic_sign_net_forward.5}
  #allocation0 [shape = 'u32[]', space=smem, size = 0x4, offset = 0x4, fixed_abs, tag = 'smem constant byte address 0x4 - core index']
  #allocation1 [shape = 'u32[144,128]{1,0:T(1,128)}', space=vmem, size = 0x12000, scoped, tag = 'internal scratch']
  %s0 = inlined_call_operand.vmem [shape: bf16[2,4,16,144], index: 0, kind: input, shape index: {}]
  %s1 = inlined_call_operand.vmem [shape: bf16[144,128], index: 1, kind: input, shape index: {}]
  %s2 = inlined_call_operand.vmem [shape: f32[1,128], index: 2, kind: input, shape index: {}]
  %s3 = inlined_call_operand.vmem [shape: f32[2,16,128], index: 3, kind: output, shape index: {}]
  %s4 = sld [smem:[#allocation0]]
  $region45: #{traffic_sign_net_forward.5} parent=0
    _
  %s6 = ssub.s32 1, %s4
  %s7 = scalar_select 0, %s6, %s4
  loop: start=0, step=1, limit=4
  $region2: #{traffic_sign_net_forward.5} parent=0 // loop_pre_header
    _
  $region3: #{traffic_sign_net_forward.5} parent=0 // loop_header
    %s9 = sphi 0, %s13
    %p10 = scmp.ge.s32.totalorder %s9, 4
    %s19 = sphi 0, %s21
    %s22 = sphi 0, %s19
    %s23 = sphi 0, %s22
    %s39 = sphi 0, %s23
    %s43 = sphi 0, %s43
    %s45 = sphi 0, %s43
    %s46 = sphi 0, %s45
    %s60 = sphi 0, %s46
    %s64 = sphi 0, %s64
    %s66 = sphi 0, %s64
    %s67 = sphi 0, %s66
    %s81 = sphi 0, %s67
    %s87 = sphi 0, %s89
    %s90 = sphi 0, %s87
    %s91 = sphi 0, %s90
    %s107 = sphi 0, %s91
  $region4: #{traffic_sign_net_forward.5} parent=0 // loop_header_branch
    %12 = sbr.rel (%p10) target = $region8
  $region5: #{traffic_sign_net_forward.5} parent=0 // loop_body
    %s14 = ssub.s32 %s9, 1
    %s15 = ssub.s32 %s9, 2
    %s16 = sadd.s32 %s9, 1
    %s17 = ssub.s32 %s9, %s16
    %p18 = scmp.eq.s32.totalorder %s17, 0
    %s20 = sadd.s32 %s19, 1
    %s21 = scalar_select %p18, %s19, %s20
    %p24 = pneg %p18
    %p25 = scmp.eq.s32.totalorder %s9, 1
    %p26 = por %p24, %p25
    %p27 = scmp.ne.s32.totalorder %s19, %s22
    %p28 = scmp.eq.s32.totalorder %s9, 0
    %p29 = por %p27, %p28
    %p30 = scmp.ne.s32.totalorder %s19, %s22
    %p31 = scmp.eq.s32.totalorder %s14, 1
    %p32 = por %p30, %p31
    %p33 = scmp.ne.s32.totalorder %s22, %s23
    %p34 = scmp.eq.s32.totalorder %s14, 0
    %p35 = por %p33, %p34
    %p36 = scmp.ne.s32.totalorder %s22, %s23
    %p37 = scmp.eq.s32.totalorder %s15, 1
    %p38 = por %p36, %p37
    %p40 = scmp.ne.s32.totalorder %s23, %s39
    %p41 = scmp.eq.s32.totalorder %s15, 0
    %p42 = por %p40, %p41
    %s44 = sadd.s32 %s43, 1
    %p47 = scmp.eq.s32.totalorder %s9, 1
    %p48 = scmp.ne.s32.totalorder %s43, %s45
    %p49 = scmp.eq.s32.totalorder %s9, 0
    %p50 = por %p48, %p49
    %p51 = scmp.ne.s32.totalorder %s43, %s45
    %p52 = scmp.eq.s32.totalorder %s14, 1
    %p53 = por %p51, %p52
    %p54 = scmp.ne.s32.totalorder %s45, %s46
    %p55 = scmp.eq.s32.totalorder %s14, 0
    %p56 = por %p54, %p55
    %p57 = scmp.ne.s32.totalorder %s45, %s46
    %p58 = scmp.eq.s32.totalorder %s15, 1
    %p59 = por %p57, %p58
    %p61 = scmp.ne.s32.totalorder %s46, %s60
    %p62 = scmp.eq.s32.totalorder %s15, 0
    %p63 = por %p61, %p62
    %s65 = sadd.s32 %s64, 1
    %p68 = scmp.eq.s32.totalorder %s9, 1
    %p69 = scmp.ne.s32.totalorder %s64, %s66
    %p70 = scmp.eq.s32.totalorder %s9, 0
    %p71 = por %p69, %p70
    %p72 = scmp.ne.s32.totalorder %s64, %s66
    %p73 = scmp.eq.s32.totalorder %s14, 1
    %p74 = por %p72, %p73
    %p75 = scmp.ne.s32.totalorder %s66, %s67
    %p76 = scmp.eq.s32.totalorder %s14, 0
    %p77 = por %p75, %p76
    %p78 = scmp.ne.s32.totalorder %s66, %s67
    %p79 = scmp.eq.s32.totalorder %s15, 1
    %p80 = por %p78, %p79
    %p82 = scmp.ne.s32.totalorder %s67, %s81
    %p83 = scmp.eq.s32.totalorder %s15, 0
    %p84 = por %p82, %p83
    %s85 = ssub.s32 %s9, %s16
    %p86 = scmp.eq.s32.totalorder %s85, 0
    %s88 = sadd.s32 %s87, 1
    %s89 = scalar_select %p86, %s87, %s88
    %p92 = pneg %p86
    %p93 = scmp.eq.s32.totalorder %s9, 1
    %p94 = por %p92, %p93
    %p95 = scmp.ne.s32.totalorder %s87, %s90
    %p96 = scmp.eq.s32.totalorder %s9, 0
    %p97 = por %p95, %p96
    %p98 = scmp.ne.s32.totalorder %s87, %s90
    %p99 = scmp.eq.s32.totalorder %s14, 1
    %p100 = por %p98, %p99
    %p101 = scmp.ne.s32.totalorder %s90, %s91
    %p102 = scmp.eq.s32.totalorder %s14, 0
    %p103 = por %p101, %p102
    %p104 = scmp.ne.s32.totalorder %s90, %s91
    %p105 = scmp.eq.s32.totalorder %s15, 1
    %p106 = por %p104, %p105
    %p108 = scmp.ne.s32.totalorder %s91, %s107
    %p109 = scmp.eq.s32.totalorder %s15, 0
    %p110 = por %p108, %p109
    %p111 = scmp.le.s32.totalorder 1, %s9
    %p112 = scmp.lt.s32.totalorder %s9, 3
    %p113 = pnand %p111, %p112
    %p114 = pneg %p113
    // Predicated region
    $region9: #{traffic_sign_net_forward.5} parent=5 // pred_check
      _
    $region10: #{traffic_sign_net_forward.5} parent=5 // pred_check_branch
      %116 = sbr.rel (%p113) target = $region12
    $region11: #{traffic_sign_net_forward.5} parent=5 // pred_region
      %s117 = ssub.s32 %s9, 1
      // Predicated region
      $region13: #{traffic_sign_net_forward.5} parent=11 // pred_check
        %p118 = pneg %p56
      $region14: #{traffic_sign_net_forward.5} parent=11 // pred_check_branch
        %120 = sbr.rel (%p118) target = $region16
      $region15: #{traffic_sign_net_forward.5} parent=11 // pred_region
        _
      $region16: #{traffic_sign_net_forward.5} parent=11 // pred_fallthru
        _
      // Predicated region
      $region17: #{traffic_sign_net_forward.5} parent=11 // pred_check
        %p121 = pneg %p77
      $region18: #{traffic_sign_net_forward.5} parent=11 // pred_check_branch
        %123 = sbr.rel (%p121) target = $region20
      $region19: #{traffic_sign_net_forward.5} parent=11 // pred_region
        _
      $region20: #{traffic_sign_net_forward.5} parent=11 // pred_fallthru
        _
    $region12: #{traffic_sign_net_forward.5} parent=5 // pred_fallthru
      _
    %p124 = scmp.lt.s32.totalorder %s9, 2
    // Predicated region
    $region21: #{traffic_sign_net_forward.5} parent=5 // pred_check
      %p125 = pneg %p124
    $region22: #{traffic_sign_net_forward.5} parent=5 // pred_check_branch
      %127 = sbr.rel (%p125) target = $region24
    $region23: #{traffic_sign_net_forward.5} parent=5 // pred_region
      // Predicated region
      $region25: #{traffic_sign_net_forward.5} parent=23 // pred_check
        %p128 = pneg %p29
      $region26: #{traffic_sign_net_forward.5} parent=23 // pred_check_branch
        %130 = sbr.rel (%p128) target = $region28
      $region27: #{traffic_sign_net_forward.5} parent=23 // pred_region
        %p131 = scmp.lt.s32.totalorder %s9, 1
        %s132 = scalar_select %p131, %s9, 1
        %s133 = smul.addr %s132, 16
        %s134 = smul.addr %s133, 4
        %s135 = scalar_lea.vmem %s0, %s134
      $region28: #{traffic_sign_net_forward.5} parent=23 // pred_fallthru
        _
    $region24: #{traffic_sign_net_forward.5} parent=5 // pred_fallthru
      _
    %p136 = scmp.le.s32.totalorder 1, %s9
    %p137 = scmp.lt.s32.totalorder %s9, 3
    %p138 = pnand %p136, %p137
    %p139 = pneg %p138
    // Predicated region
    $region29: #{traffic_sign_net_forward.5} parent=5 // pred_check
      _
    $region30: #{traffic_sign_net_forward.5} parent=5 // pred_check_branch
      %141 = sbr.rel (%p138) target = $region32
    $region31: #{traffic_sign_net_forward.5} parent=5 // pred_region
      %s142 = ssub.s32 %s9, 1
      %p143 = scmp.lt.s32.totalorder %s14, 1
      %s144 = scalar_select %p143, %s14, 1
      %s145 = smul.addr %s144, 16
      %s146 = smul.addr %s145, 4
      %s147 = scalar_lea.vmem %s0, %s146
      %p148 = pneg %p35
      %p149 = pneg %p32
      %p150 = pneg %p56
      %p151 = pneg %p53
      %p152 = pneg %p77
      %p153 = pneg %p74
      %p154 = pneg %p103
      %p155 = pneg %p100
      %p156 = scmp.lt.s32.totalorder %s14, 1
      %s157 = scalar_select %p156, %s14, 1
      %s158 = smul.addr %s157, 2
      %s159 = smul.addr %s158, 8
      %s160 = scalar_lea.vmem %s3, %s159
      %p161 = scmp.lt.s32.totalorder %s14, 1
      %s162 = scalar_select %p161, %s14, 1
      %s163 = smul.addr %s162, 16
      %s164 = smul.addr %s163, 4
      %s165 = scalar_lea.vmem %s0, %s164
      %p166 = scmp.lt.s32.totalorder %s14, 1
      %s167 = scalar_select %p166, %s14, 1
      %s168 = smul.addr %s167, 2
      %s169 = smul.addr %s168, 8
      %s170 = scalar_lea.vmem %s3, %s169
      %v172 = vld [vmem:[%s1] sm:$0xf]
      %v173 = vld [vmem:[%s1 + $0x4] sm:$0xf]
      %v174 = vld [vmem:[%s1 + $0x8] sm:$0xf]
      %v175 = vld [vmem:[%s1 + $0xc] sm:$0xf]
      %v176 = vld [vmem:[%s1 + $0x10] sm:$0xf]
      %v177 = vld [vmem:[%s1 + $0x14] sm:$0xf]
      %v178 = vld [vmem:[%s1 + $0x18] sm:$0xf]
      %v179 = vld [vmem:[%s1 + $0x1c] sm:$0xf]
      %v180 = vld [vmem:[%s1 + $0x20] sm:$0xf]
      %v181 = vld [vmem:[%s1 + $0x24] sm:$0xf]
      %v182 = vld [vmem:[%s1 + $0x28] sm:$0xf]
      %v183 = vld [vmem:[%s1 + $0x2c] sm:$0xf]
      %v184 = vld [vmem:[%s1 + $0x30] sm:$0xf]
      %v185 = vld [vmem:[%s1 + $0x34] sm:$0xf]
      %v186 = vld [vmem:[%s1 + $0x38] sm:$0xf]
      %v187 = vld [vmem:[%s1 + $0x3c] sm:$0xf]
      %v188 = vld [vmem:[%s1 + $0x40] sm:$0xf]
      %v189 = vld [vmem:[%s1 + $0x44] sm:$0xf]
      %v190 = vld [vmem:[%s165] sm:$0xff]
      %v191 = vld [vmem:[%s165 + $0x8] sm:$0xff]
      %v194 = vunpack.c.l.b16 %v190
      %v195 = vunpack.c.h.b16 %v190
      %v196 = vunpack.c.l.b16 %v191
      %v197 = vunpack.c.h.b16 %v191
      %v198 = vpack.c.b16 %v196, %v194
      %v199 = vpack.c.b16 %v197, %v195
      %v219 = vunpack.c.l.b16 %v172
      %v220 = vunpack.c.l.b16 %v173
      %v221 = vunpack.c.l.b16 %v174
      %v222 = vunpack.c.l.b16 %v175
      %v223 = vunpack.c.l.b16 %v176
      %v224 = vunpack.c.l.b16 %v177
      %v225 = vunpack.c.l.b16 %v178
      %v226 = vunpack.c.l.b16 %v179
      %v227 = vunpack.c.l.b16 %v180
      %v228 = vunpack.c.l.b16 %v181
      %v229 = vunpack.c.l.b16 %v182
      %v230 = vunpack.c.l.b16 %v183
      %v231 = vunpack.c.l.b16 %v184
      %v232 = vunpack.c.l.b16 %v185
      %v233 = vunpack.c.l.b16 %v186
      %v234 = vunpack.c.l.b16 %v187
      %v235 = vunpack.c.l.b16 %v188
      %v236 = vunpack.c.l.b16 %v189
      %v237 = vpack.c.b16 %v220, %v219
      %v238 = vpack.c.b16 %v222, %v221
      %v239 = vpack.c.b16 %v224, %v223
      %v240 = vpack.c.b16 %v226, %v225
      %v241 = vpack.c.b16 %v228, %v227
      %v242 = vpack.c.b16 %v230, %v229
      %v243 = vpack.c.b16 %v232, %v231
      %v244 = vpack.c.b16 %v234, %v233
      %v245 = vpack.c.b16 %v236, %v235
      %vm255 = vcmask 130048
      %v257 = vsel %vm255, %v199, 0
      %259 = vmatprep.subr.bf16.mxu0 0
      %260 = vmatpush1.bf16.msra.mxu0 %v237
      %261 = vmatprep.subr.bf16.mxu0 0
      %262 = vmatpush1.bf16.msra.mxu0 %v238
      %263 = vmatprep.subr.bf16.mxu0 0
      %264 = vmatpush1.bf16.msra.mxu0 %v239
      %265 = vmatprep.subr.bf16.mxu0 0
      %266 = vmatpush1.bf16.msra.mxu0 %v240
      %267 = vmatprep.subr.bf16.mxu0 0
      %268 = vmatpush1.bf16.msra.mxu0 %v241
      %269 = vmatprep.subr.bf16.mxu0 0
      %270 = vmatpush1.bf16.msra.mxu0 %v242
      %271 = vmatprep.subr.bf16.mxu0 0
      %272 = vmatpush1.bf16.msra.mxu0 %v243
      %273 = vmatprep.subr.bf16.mxu0 0
      %274 = vmatpush1.bf16.msra.mxu0 %v244
      %275 = vmatprep.subr.bf16.mxu0 0
      %276 = vmatpush1.bf16.msra.mxu0 %v245
      %277 = vmatprep.subr.bf16.mxu0 0
      %278 = vmatpush1.bf16.msra.mxu0 0
      %279 = vmatprep.subr.bf16.mxu0 0
      %280 = vmatpush1.bf16.msra.mxu0 0
      %281 = vmatprep.subr.bf16.mxu0 0
      %282 = vmatpush1.bf16.msra.mxu0 0
      %283 = vmatprep.subr.bf16.mxu0 0
      %284 = vmatpush1.bf16.msra.mxu0 0
      %285 = vmatprep.subr.bf16.mxu0 0
      %286 = vmatpush1.bf16.msra.mxu0 0
      %287 = vmatprep.subr.bf16.mxu0 0
      %288 = vmatpush1.bf16.msra.mxu0 0
      %289 = vmatprep.subr.bf16.mxu0 0
      %290 = vmatpush1.bf16.msra.mxu0 0
      %291 = vmatprep.mubr.bf16.mxu0 %v257
      %292 = vmatmul.mubr.bf16.gmra.mrb[0].mxu0 %v198
      %v293 = vpop.f32.mrb[0].mxu0
      %v294 = vadd.f32 0.0, %v293
      %v295 = vpop.f32.mrb[0].mxu0
      %v296 = vpop.f32.mrb[0].mxu0
      %v297 = vadd.f32 0.0, %v296
      %v298 = vpop.f32.mrb[0].mxu0
      %299 = vdwg.mxu0
      %s300 = scalar_lea.vmem %s165, 16
      %v301 = vld [vmem:[%s300] sm:$0xff]
      %v302 = vld [vmem:[%s300 + $0x8] sm:$0xff]
      %v305 = vunpack.c.l.b16 %v301
      %v306 = vunpack.c.h.b16 %v301
      %v307 = vunpack.c.l.b16 %v302
      %v308 = vunpack.c.h.b16 %v302
      %v309 = vpack.c.b16 %v307, %v305
      %v310 = vpack.c.b16 %v308, %v306
      %v313 = vsel %vm255, %v310, 0
      %315 = vmatprep.subr.bf16.mxu0 0
      %316 = vmatpush1.bf16.msra.mxu0 %v237
      %317 = vmatprep.subr.bf16.mxu0 0
      %318 = vmatpush1.bf16.msra.mxu0 %v238
      %319 = vmatprep.subr.bf16.mxu0 0
      %320 = vmatpush1.bf16.msra.mxu0 %v239
      %321 = vmatprep.subr.bf16.mxu0 0
      %322 = vmatpush1.bf16.msra.mxu0 %v240
      %323 = vmatprep.subr.bf16.mxu0 0
      %324 = vmatpush1.bf16.msra.mxu0 %v241
      %325 = vmatprep.subr.bf16.mxu0 0
      %326 = vmatpush1.bf16.msra.mxu0 %v242
      %327 = vmatprep.subr.bf16.mxu0 0
      %328 = vmatpush1.bf16.msra.mxu0 %v243
      %329 = vmatprep.subr.bf16.mxu0 0
      %330 = vmatpush1.bf16.msra.mxu0 %v244
      %331 = vmatprep.subr.bf16.mxu0 0
      %332 = vmatpush1.bf16.msra.mxu0 %v245
      %333 = vmatprep.subr.bf16.mxu0 0
      %334 = vmatpush1.bf16.msra.mxu0 0
      %335 = vmatprep.subr.bf16.mxu0 0
      %336 = vmatpush1.bf16.msra.mxu0 0
      %337 = vmatprep.subr.bf16.mxu0 0
      %338 = vmatpush1.bf16.msra.mxu0 0
      %339 = vmatprep.subr.bf16.mxu0 0
      %340 = vmatpush1.bf16.msra.mxu0 0
      %341 = vmatprep.subr.bf16.mxu0 0
      %342 = vmatpush1.bf16.msra.mxu0 0
      %343 = vmatprep.subr.bf16.mxu0 0
      %344 = vmatpush1.bf16.msra.mxu0 0
      %345 = vmatprep.subr.bf16.mxu0 0
      %346 = vmatpush1.bf16.msra.mxu0 0
      %347 = vmatprep.mubr.bf16.mxu0 %v313
      %348 = vmatmul.mubr.bf16.gmra.mrb[0].mxu0 %v309
      %v349 = vpop.f32.mrb[0].mxu0
      %v350 = vadd.f32 0.0, %v349
      %v351 = vpop.f32.mrb[0].mxu0
      %v352 = vpop.f32.mrb[0].mxu0
      %v353 = vadd.f32 0.0, %v352
      %v354 = vpop.f32.mrb[0].mxu0
      %355 = vdwg.mxu0
      %v356 = vmax.f32 %v294, %v350
      %v357 = vmax.f32 %v297, %v353
      %s358 = scalar_lea.vmem %s165, 32
      %v359 = vld [vmem:[%s358] sm:$0xff]
      %v360 = vld [vmem:[%s358 + $0x8] sm:$0xff]
      %v363 = vunpack.c.l.b16 %v359
      %v364 = vunpack.c.h.b16 %v359
      %v365 = vunpack.c.l.b16 %v360
      %v366 = vunpack.c.h.b16 %v360
      %v367 = vpack.c.b16 %v365, %v363
      %v368 = vpack.c.b16 %v366, %v364
      %v371 = vsel %vm255, %v368, 0
      %373 = vmatprep.subr.bf16.mxu0 0
      %374 = vmatpush1.bf16.msra.mxu0 %v237
      %375 = vmatprep.subr.bf16.mxu0 0
      %376 = vmatpush1.bf16.msra.mxu0 %v238
      %377 = vmatprep.subr.bf16.mxu0 0
      %378 = vmatpush1.bf16.msra.mxu0 %v239
      %379 = vmatprep.subr.bf16.mxu0 0
      %380 = vmatpush1.bf16.msra.mxu0 %v240
      %381 = vmatprep.subr.bf16.mxu0 0
      %382 = vmatpush1.bf16.msra.mxu0 %v241
      %383 = vmatprep.subr.bf16.mxu0 0
      %384 = vmatpush1.bf16.msra.mxu0 %v242
      %385 = vmatprep.subr.bf16.mxu0 0
      %386 = vmatpush1.bf16.msra.mxu0 %v243
      %387 = vmatprep.subr.bf16.mxu0 0
      %388 = vmatpush1.bf16.msra.mxu0 %v244
      %389 = vmatprep.subr.bf16.mxu0 0
      %390 = vmatpush1.bf16.msra.mxu0 %v245
      %391 = vmatprep.subr.bf16.mxu0 0
      %392 = vmatpush1.bf16.msra.mxu0 0
      %393 = vmatprep.subr.bf16.mxu0 0
      %394 = vmatpush1.bf16.msra.mxu0 0
      %395 = vmatprep.subr.bf16.mxu0 0
      %396 = vmatpush1.bf16.msra.mxu0 0
      %397 = vmatprep.subr.bf16.mxu0 0
      %398 = vmatpush1.bf16.msra.mxu0 0
      %399 = vmatprep.subr.bf16.mxu0 0
      %400 = vmatpush1.bf16.msra.mxu0 0
      %401 = vmatprep.subr.bf16.mxu0 0
      %402 = vmatpush1.bf16.msra.mxu0 0
      %403 = vmatprep.subr.bf16.mxu0 0
      %404 = vmatpush1.bf16.msra.mxu0 0
      %405 = vmatprep.mubr.bf16.mxu0 %v371
      %406 = vmatmul.mubr.bf16.gmra.mrb[0].mxu0 %v367
      %v407 = vpop.f32.mrb[0].mxu0
      %v408 = vadd.f32 0.0, %v407
      %v409 = vpop.f32.mrb[0].mxu0
      %v410 = vpop.f32.mrb[0].mxu0
      %v411 = vadd.f32 0.0, %v410
      %v412 = vpop.f32.mrb[0].mxu0
      %413 = vdwg.mxu0
      %v414 = vmax.f32 %v356, %v408
      %v415 = vmax.f32 %v357, %v411
      %s416 = scalar_lea.vmem %s165, 48
      %v417 = vld [vmem:[%s416] sm:$0xff]
      %v418 = vld [vmem:[%s416 + $0x8] sm:$0xff]
      %v421 = vunpack.c.l.b16 %v417
      %v422 = vunpack.c.h.b16 %v417
      %v423 = vunpack.c.l.b16 %v418
      %v424 = vunpack.c.h.b16 %v418
      %v425 = vpack.c.b16 %v423, %v421
      %v426 = vpack.c.b16 %v424, %v422
      %v429 = vsel %vm255, %v426, 0
      %431 = vmatprep.subr.bf16.mxu0 0
      %432 = vmatpush1.bf16.msra.mxu0 %v237
      %433 = vmatprep.subr.bf16.mxu0 0
      %434 = vmatpush1.bf16.msra.mxu0 %v238
      %435 = vmatprep.subr.bf16.mxu0 0
      %436 = vmatpush1.bf16.msra.mxu0 %v239
      %437 = vmatprep.subr.bf16.mxu0 0
      %438 = vmatpush1.bf16.msra.mxu0 %v240
      %439 = vmatprep.subr.bf16.mxu0 0
      %440 = vmatpush1.bf16.msra.mxu0 %v241
      %441 = vmatprep.subr.bf16.mxu0 0
      %442 = vmatpush1.bf16.msra.mxu0 %v242
      %443 = vmatprep.subr.bf16.mxu0 0
      %444 = vmatpush1.bf16.msra.mxu0 %v243
      %445 = vmatprep.subr.bf16.mxu0 0
      %446 = vmatpush1.bf16.msra.mxu0 %v244
      %447 = vmatprep.subr.bf16.mxu0 0
      %448 = vmatpush1.bf16.msra.mxu0 %v245
      %449 = vmatprep.subr.bf16.mxu0 0
      %450 = vmatpush1.bf16.msra.mxu0 0
      %451 = vmatprep.subr.bf16.mxu0 0
      %452 = vmatpush1.bf16.msra.mxu0 0
      %453 = vmatprep.subr.bf16.mxu0 0
      %454 = vmatpush1.bf16.msra.mxu0 0
      %455 = vmatprep.subr.bf16.mxu0 0
      %456 = vmatpush1.bf16.msra.mxu0 0
      %457 = vmatprep.subr.bf16.mxu0 0
      %458 = vmatpush1.bf16.msra.mxu0 0
      %459 = vmatprep.subr.bf16.mxu0 0
      %460 = vmatpush1.bf16.msra.mxu0 0
      %461 = vmatprep.subr.bf16.mxu0 0
      %462 = vmatpush1.bf16.msra.mxu0 0
      %463 = vmatprep.mubr.bf16.mxu0 %v429
      %464 = vmatmul.mubr.bf16.gmra.mrb[0].mxu0 %v425
      %v465 = vpop.f32.mrb[0].mxu0
      %v466 = vadd.f32 0.0, %v465
      %v467 = vpop.f32.mrb[0].mxu0
      %v468 = vpop.f32.mrb[0].mxu0
      %v469 = vadd.f32 0.0, %v468
      %v470 = vpop.f32.mrb[0].mxu0
      %471 = vdwg.mxu0
      %v472 = vmax.f32 %v414, %v466
      %v473 = vmax.f32 %v415, %v469
      %v474 = vld [vmem:[%s2] sm:$0x1]
      %v476 = vlaneseq
      %v477 = vshrl.u32 %v476, 7
      %v478 = vsub.s32 0, %v477
      %v479 = vrot.slane %v474, %v478
      %v481 = vadd.f32 %v472, %v479
      %v482 = vadd.f32 %v473, %v479
      %v483 = vmax.f32 %v481, 0.0
      %v484 = vmax.f32 %v482, 0.0
      %485 = vst [vmem:[%s170] sm:$0xff] %v483
      %486 = vst [vmem:[%s170 + $0x8] sm:$0xff] %v484
      %p487 = scmp.lt.s32.totalorder %s14, 1
      %s488 = scalar_select %p487, %s14, 1
      %s489 = smul.addr %s488, 2
      %s490 = smul.addr %s489, 8
      %s491 = scalar_lea.vmem %s3, %s490
      // Predicated region
      $region33: #{traffic_sign_net_forward.5} parent=31 // pred_check
        %p492 = pneg %p100
      $region34: #{traffic_sign_net_forward.5} parent=31 // pred_check_branch
        %494 = sbr.rel (%p492) target = $region36
      $region35: #{traffic_sign_net_forward.5} parent=31 // pred_region
        _
      $region36: #{traffic_sign_net_forward.5} parent=31 // pred_fallthru
        _
    $region32: #{traffic_sign_net_forward.5} parent=5 // pred_fallthru
      _
    %p495 = scmp.le.s32.totalorder 2, %s9
    // Predicated region
    $region37: #{traffic_sign_net_forward.5} parent=5 // pred_check
      %p496 = pneg %p495
    $region38: #{traffic_sign_net_forward.5} parent=5 // pred_check_branch
      %498 = sbr.rel (%p496) target = $region40
    $region39: #{traffic_sign_net_forward.5} parent=5 // pred_region
      %s499 = ssub.s32 %s9, 2
      // Predicated region
      $region41: #{traffic_sign_net_forward.5} parent=39 // pred_check
        %p500 = pneg %p106
      $region42: #{traffic_sign_net_forward.5} parent=39 // pred_check_branch
        %502 = sbr.rel (%p500) target = $region44
      $region43: #{traffic_sign_net_forward.5} parent=39 // pred_region
        %p503 = scmp.lt.s32.totalorder %s15, 1
        %s504 = scalar_select %p503, %s15, 1
        %s505 = smul.addr %s504, 2
        %s506 = smul.addr %s505, 8
        %s507 = scalar_lea.vmem %s3, %s506
      $region44: #{traffic_sign_net_forward.5} parent=39 // pred_fallthru
        _
    $region40: #{traffic_sign_net_forward.5} parent=5 // pred_fallthru
      _
  $region6: #{traffic_sign_net_forward.5} parent=0 // loop_footer
    %s13 = sadd.s32 1, %s9
  $region7: #{traffic_sign_net_forward.5} parent=0 // loop_footer_branch
    %8 = sbr.rel target = $region3
  $region8: #{traffic_sign_net_forward.5} parent=0 // loop_exit
    _

// kernel: traffic_sign_net_forward.6
$region0: #{traffic_sign_net_forward.6}
  #allocation0 [shape = 'u32[]', space=smem, size = 0x4, offset = 0x4, fixed_abs, tag = 'smem constant byte address 0x4 - core index']
  #allocation1 [shape = 'u32[144,128]{1,0:T(1,128)}', space=vmem, size = 0x12000, scoped, tag = 'internal scratch']
  %s0 = inlined_call_operand.vmem [shape: bf16[2,4,4,288], index: 0, kind: input, shape index: {}]
  %s1 = inlined_call_operand.vmem [shape: bf16[288,128], index: 1, kind: input, shape index: {}]
  %s2 = inlined_call_operand.vmem [shape: f32[1,128], index: 2, kind: input, shape index: {}]
  %s3 = inlined_call_operand.vmem [shape: f32[2,4,128], index: 3, kind: output, shape index: {}]
  %s4 = sld [smem:[#allocation0]]
  $region45: #{traffic_sign_net_forward.6} parent=0
    _
  %s6 = ssub.s32 1, %s4
  %s7 = scalar_select 0, %s6, %s4
  loop: start=0, step=1, limit=4
  $region2: #{traffic_sign_net_forward.6} parent=0 // loop_pre_header
    _
  $region3: #{traffic_sign_net_forward.6} parent=0 // loop_header
    %s9 = sphi 0, %s13
    %p10 = scmp.ge.s32.totalorder %s9, 4
    %s19 = sphi 0, %s21
    %s22 = sphi 0, %s19
    %s23 = sphi 0, %s22
    %s39 = sphi 0, %s23
    %s43 = sphi 0, %s43
    %s45 = sphi 0, %s43
    %s46 = sphi 0, %s45
    %s60 = sphi 0, %s46
    %s64 = sphi 0, %s64
    %s66 = sphi 0, %s64
    %s67 = sphi 0, %s66
    %s81 = sphi 0, %s67
    %s87 = sphi 0, %s89
    %s90 = sphi 0, %s87
    %s91 = sphi 0, %s90
    %s107 = sphi 0, %s91
  $region4: #{traffic_sign_net_forward.6} parent=0 // loop_header_branch
    %12 = sbr.rel (%p10) target = $region8
  $region5: #{traffic_sign_net_forward.6} parent=0 // loop_body
    %s14 = ssub.s32 %s9, 1
    %s15 = ssub.s32 %s9, 2
    %s16 = sadd.s32 %s9, 1
    %s17 = ssub.s32 %s9, %s16
    %p18 = scmp.eq.s32.totalorder %s17, 0
    %s20 = sadd.s32 %s19, 1
    %s21 = scalar_select %p18, %s19, %s20
    %p24 = pneg %p18
    %p25 = scmp.eq.s32.totalorder %s9, 1
    %p26 = por %p24, %p25
    %p27 = scmp.ne.s32.totalorder %s19, %s22
    %p28 = scmp.eq.s32.totalorder %s9, 0
    %p29 = por %p27, %p28
    %p30 = scmp.ne.s32.totalorder %s19, %s22
    %p31 = scmp.eq.s32.totalorder %s14, 1
    %p32 = por %p30, %p31
    %p33 = scmp.ne.s32.totalorder %s22, %s23
    %p34 = scmp.eq.s32.totalorder %s14, 0
    %p35 = por %p33, %p34
    %p36 = scmp.ne.s32.totalorder %s22, %s23
    %p37 = scmp.eq.s32.totalorder %s15, 1
    %p38 = por %p36, %p37
    %p40 = scmp.ne.s32.totalorder %s23, %s39
    %p41 = scmp.eq.s32.totalorder %s15, 0
    %p42 = por %p40, %p41
    %s44 = sadd.s32 %s43, 1
    %p47 = scmp.eq.s32.totalorder %s9, 1
    %p48 = scmp.ne.s32.totalorder %s43, %s45
    %p49 = scmp.eq.s32.totalorder %s9, 0
    %p50 = por %p48, %p49
    %p51 = scmp.ne.s32.totalorder %s43, %s45
    %p52 = scmp.eq.s32.totalorder %s14, 1
    %p53 = por %p51, %p52
    %p54 = scmp.ne.s32.totalorder %s45, %s46
    %p55 = scmp.eq.s32.totalorder %s14, 0
    %p56 = por %p54, %p55
    %p57 = scmp.ne.s32.totalorder %s45, %s46
    %p58 = scmp.eq.s32.totalorder %s15, 1
    %p59 = por %p57, %p58
    %p61 = scmp.ne.s32.totalorder %s46, %s60
    %p62 = scmp.eq.s32.totalorder %s15, 0
    %p63 = por %p61, %p62
    %s65 = sadd.s32 %s64, 1
    %p68 = scmp.eq.s32.totalorder %s9, 1
    %p69 = scmp.ne.s32.totalorder %s64, %s66
    %p70 = scmp.eq.s32.totalorder %s9, 0
    %p71 = por %p69, %p70
    %p72 = scmp.ne.s32.totalorder %s64, %s66
    %p73 = scmp.eq.s32.totalorder %s14, 1
    %p74 = por %p72, %p73
    %p75 = scmp.ne.s32.totalorder %s66, %s67
    %p76 = scmp.eq.s32.totalorder %s14, 0
    %p77 = por %p75, %p76
    %p78 = scmp.ne.s32.totalorder %s66, %s67
    %p79 = scmp.eq.s32.totalorder %s15, 1
    %p80 = por %p78, %p79
    %p82 = scmp.ne.s32.totalorder %s67, %s81
    %p83 = scmp.eq.s32.totalorder %s15, 0
    %p84 = por %p82, %p83
    %s85 = ssub.s32 %s9, %s16
    %p86 = scmp.eq.s32.totalorder %s85, 0
    %s88 = sadd.s32 %s87, 1
    %s89 = scalar_select %p86, %s87, %s88
    %p92 = pneg %p86
    %p93 = scmp.eq.s32.totalorder %s9, 1
    %p94 = por %p92, %p93
    %p95 = scmp.ne.s32.totalorder %s87, %s90
    %p96 = scmp.eq.s32.totalorder %s9, 0
    %p97 = por %p95, %p96
    %p98 = scmp.ne.s32.totalorder %s87, %s90
    %p99 = scmp.eq.s32.totalorder %s14, 1
    %p100 = por %p98, %p99
    %p101 = scmp.ne.s32.totalorder %s90, %s91
    %p102 = scmp.eq.s32.totalorder %s14, 0
    %p103 = por %p101, %p102
    %p104 = scmp.ne.s32.totalorder %s90, %s91
    %p105 = scmp.eq.s32.totalorder %s15, 1
    %p106 = por %p104, %p105
    %p108 = scmp.ne.s32.totalorder %s91, %s107
    %p109 = scmp.eq.s32.totalorder %s15, 0
    %p110 = por %p108, %p109
    %p111 = scmp.le.s32.totalorder 1, %s9
    %p112 = scmp.lt.s32.totalorder %s9, 3
    %p113 = pnand %p111, %p112
    %p114 = pneg %p113
    // Predicated region
    $region9: #{traffic_sign_net_forward.6} parent=5 // pred_check
      _
    $region10: #{traffic_sign_net_forward.6} parent=5 // pred_check_branch
      %116 = sbr.rel (%p113) target = $region12
    $region11: #{traffic_sign_net_forward.6} parent=5 // pred_region
      %s117 = ssub.s32 %s9, 1
      // Predicated region
      $region13: #{traffic_sign_net_forward.6} parent=11 // pred_check
        %p118 = pneg %p56
      $region14: #{traffic_sign_net_forward.6} parent=11 // pred_check_branch
        %120 = sbr.rel (%p118) target = $region16
      $region15: #{traffic_sign_net_forward.6} parent=11 // pred_region
        _
      $region16: #{traffic_sign_net_forward.6} parent=11 // pred_fallthru
        _
      // Predicated region
      $region17: #{traffic_sign_net_forward.6} parent=11 // pred_check
        %p121 = pneg %p77
      $region18: #{traffic_sign_net_forward.6} parent=11 // pred_check_branch
        %123 = sbr.rel (%p121) target = $region20
      $region19: #{traffic_sign_net_forward.6} parent=11 // pred_region
        _
      $region20: #{traffic_sign_net_forward.6} parent=11 // pred_fallthru
        _
    $region12: #{traffic_sign_net_forward.6} parent=5 // pred_fallthru
      _
    %p124 = scmp.lt.s32.totalorder %s9, 2
    // Predicated region
    $region21: #{traffic_sign_net_forward.6} parent=5 // pred_check
      %p125 = pneg %p124
    $region22: #{traffic_sign_net_forward.6} parent=5 // pred_check_branch
      %127 = sbr.rel (%p125) target = $region24
    $region23: #{traffic_sign_net_forward.6} parent=5 // pred_region
      // Predicated region
      $region25: #{traffic_sign_net_forward.6} parent=23 // pred_check
        %p128 = pneg %p29
      $region26: #{traffic_sign_net_forward.6} parent=23 // pred_check_branch
        %130 = sbr.rel (%p128) target = $region28
      $region27: #{traffic_sign_net_forward.6} parent=23 // pred_region
        %p131 = scmp.lt.s32.totalorder %s9, 1
        %s132 = scalar_select %p131, %s9, 1
        %s133 = smul.addr %s132, 12
        %s134 = smul.addr %s133, 2
        %s135 = scalar_lea.vmem %s0, %s134
      $region28: #{traffic_sign_net_forward.6} parent=23 // pred_fallthru
        _
    $region24: #{traffic_sign_net_forward.6} parent=5 // pred_fallthru
      _
    %p136 = scmp.le.s32.totalorder 1, %s9
    %p137 = scmp.lt.s32.totalorder %s9, 3
    %p138 = pnand %p136, %p137
    %p139 = pneg %p138
    // Predicated region
    $region29: #{traffic_sign_net_forward.6} parent=5 // pred_check
      _
    $region30: #{traffic_sign_net_forward.6} parent=5 // pred_check_branch
      %141 = sbr.rel (%p138) target = $region32
    $region31: #{traffic_sign_net_forward.6} parent=5 // pred_region
      %s142 = ssub.s32 %s9, 1
      %p143 = scmp.lt.s32.totalorder %s14, 1
      %s144 = scalar_select %p143, %s14, 1
      %s145 = smul.addr %s144, 12
      %s146 = smul.addr %s145, 2
      %s147 = scalar_lea.vmem %s0, %s146
      %p148 = pneg %p35
      %p149 = pneg %p32
      %p150 = pneg %p56
      %p151 = pneg %p53
      %p152 = pneg %p77
      %p153 = pneg %p74
      %p154 = pneg %p103
      %p155 = pneg %p100
      %p156 = scmp.lt.s32.totalorder %s14, 1
      %s157 = scalar_select %p156, %s14, 1
      %s158 = smul.addr %s157, 4
      %s159 = scalar_lea.vmem %s3, %s158
      %p160 = scmp.lt.s32.totalorder %s14, 1
      %s161 = scalar_select %p160, %s14, 1
      %s162 = smul.addr %s161, 12
      %s163 = smul.addr %s162, 2
      %s164 = scalar_lea.vmem %s0, %s163
      %p165 = scmp.lt.s32.totalorder %s14, 1
      %s166 = scalar_select %p165, %s14, 1
      %s167 = smul.addr %s166, 4
      %s168 = scalar_lea.vmem %s3, %s167
      %v170 = vld [vmem:[%s1] sm:$0xf]
      %v171 = vld [vmem:[%s1 + $0x4] sm:$0xf]
      %v172 = vld [vmem:[%s1 + $0x8] sm:$0xf]
      %v173 = vld [vmem:[%s1 + $0xc] sm:$0xf]
      %v174 = vld [vmem:[%s1 + $0x10] sm:$0xf]
      %v175 = vld [vmem:[%s1 + $0x14] sm:$0xf]
      %v176 = vld [vmem:[%s1 + $0x18] sm:$0xf]
      %v177 = vld [vmem:[%s1 + $0x1c] sm:$0xf]
      %v178 = vld [vmem:[%s1 + $0x20] sm:$0xf]
      %v179 = vld [vmem:[%s1 + $0x24] sm:$0xf]
      %v180 = vld [vmem:[%s1 + $0x28] sm:$0xf]
      %v181 = vld [vmem:[%s1 + $0x2c] sm:$0xf]
      %v182 = vld [vmem:[%s1 + $0x30] sm:$0xf]
      %v183 = vld [vmem:[%s1 + $0x34] sm:$0xf]
      %v184 = vld [vmem:[%s1 + $0x38] sm:$0xf]
      %v185 = vld [vmem:[%s1 + $0x3c] sm:$0xf]
      %v186 = vld [vmem:[%s1 + $0x40] sm:$0xf]
      %v187 = vld [vmem:[%s1 + $0x44] sm:$0xf]
      %v188 = vld [vmem:[%s1 + $0x48] sm:$0xf]
      %v189 = vld [vmem:[%s1 + $0x4c] sm:$0xf]
      %v190 = vld [vmem:[%s1 + $0x50] sm:$0xf]
      %v191 = vld [vmem:[%s1 + $0x54] sm:$0xf]
      %v192 = vld [vmem:[%s1 + $0x58] sm:$0xf]
      %v193 = vld [vmem:[%s1 + $0x5c] sm:$0xf]
      %v194 = vld [vmem:[%s1 + $0x60] sm:$0xf]
      %v195 = vld [vmem:[%s1 + $0x64] sm:$0xf]
      %v196 = vld [vmem:[%s1 + $0x68] sm:$0xf]
      %v197 = vld [vmem:[%s1 + $0x6c] sm:$0xf]
      %v198 = vld [vmem:[%s1 + $0x70] sm:$0xf]
      %v199 = vld [vmem:[%s1 + $0x74] sm:$0xf]
      %v200 = vld [vmem:[%s1 + $0x78] sm:$0xf]
      %v201 = vld [vmem:[%s1 + $0x7c] sm:$0xf]
      %v202 = vld [vmem:[%s1 + $0x80] sm:$0xf]
      %v203 = vld [vmem:[%s1 + $0x84] sm:$0xf]
      %v204 = vld [vmem:[%s1 + $0x88] sm:$0xf]
      %v205 = vld [vmem:[%s1 + $0x8c] sm:$0xf]
      %v206 = vld [vmem:[%s164] sm:$0x3f]
      %v208 = vcombine.high %v206, %v206
      %v210 = vunpack.c.l.s4 1983009808
      %v211 = vunpack.c.0.s8 %v210
      %v212 = vlaneseq
      %v213 = vshrl.u32 %v212, 7
      %v214 = vsub.s32 %v211, %v213
      %v215 = vrot.slane %v206, %v214
      %v217 = vunpack.c.l.s4 1983009808
      %v218 = vunpack.c.0.s8 %v217
      %v219 = vlaneseq
      %v220 = vshrl.u32 %v219, 7
      %v221 = vsub.s32 %v218, %v220
      %v222 = vrot.slane %v208, %v221
      %v223 = vcombine.high %v215, %v215
      %v262 = vunpack.c.l.b16 %v170
      %v263 = vunpack.c.l.b16 %v171
      %v264 = vunpack.c.l.b16 %v172
      %v265 = vunpack.c.l.b16 %v173
      %v266 = vunpack.c.l.b16 %v174
      %v267 = vunpack.c.l.b16 %v175
      %v268 = vunpack.c.l.b16 %v176
      %v269 = vunpack.c.l.b16 %v177
      %v270 = vunpack.c.l.b16 %v178
      %v271 = vunpack.c.l.b16 %v179
      %v272 = vunpack.c.l.b16 %v180
      %v273 = vunpack.c.l.b16 %v181
      %v274 = vunpack.c.l.b16 %v182
      %v275 = vunpack.c.l.b16 %v183
      %v276 = vunpack.c.l.b16 %v184
      %v277 = vunpack.c.l.b16 %v185
      %v278 = vunpack.c.l.b16 %v186
      %v279 = vunpack.c.l.b16 %v187
      %v280 = vunpack.c.l.b16 %v188
      %v281 = vunpack.c.l.b16 %v189
      %v282 = vunpack.c.l.b16 %v190
      %v283 = vunpack.c.l.b16 %v191
      %v284 = vunpack.c.l.b16 %v192
      %v285 = vunpack.c.l.b16 %v193
      %v286 = vunpack.c.l.b16 %v194
      %v287 = vunpack.c.l.b16 %v195
      %v288 = vunpack.c.l.b16 %v196
      %v289 = vunpack.c.l.b16 %v197
      %v290 = vunpack.c.l.b16 %v198
      %v291 = vunpack.c.l.b16 %v199
      %v292 = vunpack.c.l.b16 %v200
      %v293 = vunpack.c.l.b16 %v201
      %v294 = vunpack.c.l.b16 %v202
      %v295 = vunpack.c.l.b16 %v203
      %v296 = vunpack.c.l.b16 %v204
      %v297 = vunpack.c.l.b16 %v205
      %v298 = vpack.c.b16 %v263, %v262
      %v299 = vpack.c.b16 %v265, %v264
      %v300 = vpack.c.b16 %v267, %v266
      %v301 = vpack.c.b16 %v269, %v268
      %v302 = vpack.c.b16 %v271, %v270
      %v303 = vpack.c.b16 %v273, %v272
      %v304 = vpack.c.b16 %v275, %v274
      %v305 = vpack.c.b16 %v277, %v276
      %v306 = vpack.c.b16 %v279, %v278
      %v307 = vpack.c.b16 %v281, %v280
      %v308 = vpack.c.b16 %v283, %v282
      %v309 = vpack.c.b16 %v285, %v284
      %v310 = vpack.c.b16 %v287, %v286
      %v311 = vpack.c.b16 %v289, %v288
      %v312 = vpack.c.b16 %v291, %v290
      %v313 = vpack.c.b16 %v293, %v292
      %v314 = vpack.c.b16 %v295, %v294
      %v315 = vpack.c.b16 %v297, %v296
      %vm334 = vcmask 261120
      %v336 = vsel %vm334, %v222, 0
      %338 = vmatprep.subr.bf16.mxu0 0
      %339 = vmatpush1.bf16.msra.mxu0 %v298
      %340 = vmatprep.subr.bf16.mxu0 0
      %341 = vmatpush1.bf16.msra.mxu0 %v299
      %342 = vmatprep.subr.bf16.mxu0 0
      %343 = vmatpush1.bf16.msra.mxu0 %v300
      %344 = vmatprep.subr.bf16.mxu0 0
      %345 = vmatpush1.bf16.msra.mxu0 %v301
      %346 = vmatprep.subr.bf16.mxu0 0
      %347 = vmatpush1.bf16.msra.mxu0 %v302
      %348 = vmatprep.subr.bf16.mxu0 0
      %349 = vmatpush1.bf16.msra.mxu0 %v303
      %350 = vmatprep.subr.bf16.mxu0 0
      %351 = vmatpush1.bf16.msra.mxu0 %v304
      %352 = vmatprep.subr.bf16.mxu0 0
      %353 = vmatpush1.bf16.msra.mxu0 %v305
      %354 = vmatprep.subr.bf16.mxu0 0
      %355 = vmatpush1.bf16.msra.mxu0 %v306
      %356 = vmatprep.subr.bf16.mxu0 0
      %357 = vmatpush1.bf16.msra.mxu0 %v307
      %358 = vmatprep.subr.bf16.mxu0 0
      %359 = vmatpush1.bf16.msra.mxu0 %v308
      %360 = vmatprep.subr.bf16.mxu0 0
      %361 = vmatpush1.bf16.msra.mxu0 %v309
      %362 = vmatprep.subr.bf16.mxu0 0
      %363 = vmatpush1.bf16.msra.mxu0 %v310
      %364 = vmatprep.subr.bf16.mxu0 0
      %365 = vmatpush1.bf16.msra.mxu0 %v311
      %366 = vmatprep.subr.bf16.mxu0 0
      %367 = vmatpush1.bf16.msra.mxu0 %v312
      %368 = vmatprep.subr.bf16.mxu0 0
      %369 = vmatpush1.bf16.msra.mxu0 %v313
      %370 = vmatprep.mubr.bf16.mxu0 %v223
      %371 = vmatmul.mubr.bf16.gmra.mrb[0].mxu0 %v215
      %v372 = vpop.f32.mrb[0].mxu0
      %v373 = vadd.f32 0.0, %v372
      %v374 = vpop.f32.mrb[0].mxu0
      %v375 = vpop.f32.mrb[0].mxu0
      %v376 = vpop.f32.mrb[0].mxu0
      %377 = vdwg.mxu0
      %378 = vmatprep.subr.bf16.mxu0 0
      %379 = vmatpush1.bf16.msra.mxu0 %v314
      %380 = vmatprep.subr.bf16.mxu0 0
      %381 = vmatpush1.bf16.msra.mxu0 %v315
      %382 = vmatprep.subr.bf16.mxu0 0
      %383 = vmatpush1.bf16.msra.mxu0 0
      %384 = vmatprep.subr.bf16.mxu0 0
      %385 = vmatpush1.bf16.msra.mxu0 0
      %386 = vmatprep.subr.bf16.mxu0 0
      %387 = vmatpush1.bf16.msra.mxu0 0
      %388 = vmatprep.subr.bf16.mxu0 0
      %389 = vmatpush1.bf16.msra.mxu0 0
      %390 = vmatprep.subr.bf16.mxu0 0
      %391 = vmatpush1.bf16.msra.mxu0 0
      %392 = vmatprep.subr.bf16.mxu0 0
      %393 = vmatpush1.bf16.msra.mxu0 0
      %394 = vmatprep.subr.bf16.mxu0 0
      %395 = vmatpush1.bf16.msra.mxu0 0
      %396 = vmatprep.subr.bf16.mxu0 0
      %397 = vmatpush1.bf16.msra.mxu0 0
      %398 = vmatprep.subr.bf16.mxu0 0
      %399 = vmatpush1.bf16.msra.mxu0 0
      %400 = vmatprep.subr.bf16.mxu0 0
      %401 = vmatpush1.bf16.msra.mxu0 0
      %402 = vmatprep.subr.bf16.mxu0 0
      %403 = vmatpush1.bf16.msra.mxu0 0
      %404 = vmatprep.subr.bf16.mxu0 0
      %405 = vmatpush1.bf16.msra.mxu0 0
      %406 = vmatprep.subr.bf16.mxu0 0
      %407 = vmatpush1.bf16.msra.mxu0 0
      %408 = vmatprep.subr.bf16.mxu0 0
      %409 = vmatpush1.bf16.msra.mxu0 0
      %410 = vmatprep.mubr.bf16.mxu0 0
      %411 = vmatmul.mubr.bf16.gmra.mrb[0].mxu0 %v336
      %v412 = vpop.f32.mrb[0].mxu0
      %v413 = vadd.f32 %v373, %v412
      %v414 = vpop.f32.mrb[0].mxu0
      %v415 = vpop.f32.mrb[0].mxu0
      %v416 = vpop.f32.mrb[0].mxu0
      %417 = vdwg.mxu0
      %s418 = scalar_lea.vmem %s164, 6
      %v419 = vld [vmem:[%s418] sm:$0x3f]
      %v421 = vcombine.high %v419, %v419
      %v423 = vunpack.c.l.s4 1983009808
      %v424 = vunpack.c.0.s8 %v423
      %v425 = vlaneseq
      %v426 = vshrl.u32 %v425, 7
      %v427 = vsub.s32 %v424, %v426
      %v428 = vrot.slane %v419, %v427
      %v430 = vunpack.c.l.s4 1983009808
      %v431 = vunpack.c.0.s8 %v430
      %v432 = vlaneseq
      %v433 = vshrl.u32 %v432, 7
      %v434 = vsub.s32 %v431, %v433
      %v435 = vrot.slane %v421, %v434
      %v436 = vcombine.high %v428, %v428
      %v440 = vsel %vm334, %v435, 0
      %442 = vmatprep.subr.bf16.mxu0 0
      %443 = vmatpush1.bf16.msra.mxu0 %v298
      %444 = vmatprep.subr.bf16.mxu0 0
      %445 = vmatpush1.bf16.msra.mxu0 %v299
      %446 = vmatprep.subr.bf16.mxu0 0
      %447 = vmatpush1.bf16.msra.mxu0 %v300
      %448 = vmatprep.subr.bf16.mxu0 0
      %449 = vmatpush1.bf16.msra.mxu0 %v301
      %450 = vmatprep.subr.bf16.mxu0 0
      %451 = vmatpush1.bf16.msra.mxu0 %v302
      %452 = vmatprep.subr.bf16.mxu0 0
      %453 = vmatpush1.bf16.msra.mxu0 %v303
      %454 = vmatprep.subr.bf16.mxu0 0
      %455 = vmatpush1.bf16.msra.mxu0 %v304
      %456 = vmatprep.subr.bf16.mxu0 0
      %457 = vmatpush1.bf16.msra.mxu0 %v305
      %458 = vmatprep.subr.bf16.mxu0 0
      %459 = vmatpush1.bf16.msra.mxu0 %v306
      %460 = vmatprep.subr.bf16.mxu0 0
      %461 = vmatpush1.bf16.msra.mxu0 %v307
      %462 = vmatprep.subr.bf16.mxu0 0
      %463 = vmatpush1.bf16.msra.mxu0 %v308
      %464 = vmatprep.subr.bf16.mxu0 0
      %465 = vmatpush1.bf16.msra.mxu0 %v309
      %466 = vmatprep.subr.bf16.mxu0 0
      %467 = vmatpush1.bf16.msra.mxu0 %v310
      %468 = vmatprep.subr.bf16.mxu0 0
      %469 = vmatpush1.bf16.msra.mxu0 %v311
      %470 = vmatprep.subr.bf16.mxu0 0
      %471 = vmatpush1.bf16.msra.mxu0 %v312
      %472 = vmatprep.subr.bf16.mxu0 0
      %473 = vmatpush1.bf16.msra.mxu0 %v313
      %474 = vmatprep.mubr.bf16.mxu0 %v436
      %475 = vmatmul.mubr.bf16.gmra.mrb[0].mxu0 %v428
      %v476 = vpop.f32.mrb[0].mxu0
      %v477 = vadd.f32 0.0, %v476
      %v478 = vpop.f32.mrb[0].mxu0
      %v479 = vpop.f32.mrb[0].mxu0
      %v480 = vpop.f32.mrb[0].mxu0
      %481 = vdwg.mxu0
      %482 = vmatprep.subr.bf16.mxu0 0
      %483 = vmatpush1.bf16.msra.mxu0 %v314
      %484 = vmatprep.subr.bf16.mxu0 0
      %485 = vmatpush1.bf16.msra.mxu0 %v315
      %486 = vmatprep.subr.bf16.mxu0 0
      %487 = vmatpush1.bf16.msra.mxu0 0
      %488 = vmatprep.subr.bf16.mxu0 0
      %489 = vmatpush1.bf16.msra.mxu0 0
      %490 = vmatprep.subr.bf16.mxu0 0
      %491 = vmatpush1.bf16.msra.mxu0 0
      %492 = vmatprep.subr.bf16.mxu0 0
      %493 = vmatpush1.bf16.msra.mxu0 0
      %494 = vmatprep.subr.bf16.mxu0 0
      %495 = vmatpush1.bf16.msra.mxu0 0
      %496 = vmatprep.subr.bf16.mxu0 0
      %497 = vmatpush1.bf16.msra.mxu0 0
      %498 = vmatprep.subr.bf16.mxu0 0
      %499 = vmatpush1.bf16.msra.mxu0 0
      %500 = vmatprep.subr.bf16.mxu0 0
      %501 = vmatpush1.bf16.msra.mxu0 0
      %502 = vmatprep.subr.bf16.mxu0 0
      %503 = vmatpush1.bf16.msra.mxu0 0
      %504 = vmatprep.subr.bf16.mxu0 0
      %505 = vmatpush1.bf16.msra.mxu0 0
      %506 = vmatprep.subr.bf16.mxu0 0
      %507 = vmatpush1.bf16.msra.mxu0 0
      %508 = vmatprep.subr.bf16.mxu0 0
      %509 = vmatpush1.bf16.msra.mxu0 0
      %510 = vmatprep.subr.bf16.mxu0 0
      %511 = vmatpush1.bf16.msra.mxu0 0
      %512 = vmatprep.subr.bf16.mxu0 0
      %513 = vmatpush1.bf16.msra.mxu0 0
      %514 = vmatprep.mubr.bf16.mxu0 0
      %515 = vmatmul.mubr.bf16.gmra.mrb[0].mxu0 %v440
      %v516 = vpop.f32.mrb[0].mxu0
      %v517 = vadd.f32 %v477, %v516
      %v518 = vpop.f32.mrb[0].mxu0
      %v519 = vpop.f32.mrb[0].mxu0
      %v520 = vpop.f32.mrb[0].mxu0
      %521 = vdwg.mxu0
      %v522 = vmax.f32 %v413, %v517
      %s523 = scalar_lea.vmem %s164, 12
      %v524 = vld [vmem:[%s523] sm:$0x3f]
      %v526 = vcombine.high %v524, %v524
      %v528 = vunpack.c.l.s4 1983009808
      %v529 = vunpack.c.0.s8 %v528
      %v530 = vlaneseq
      %v531 = vshrl.u32 %v530, 7
      %v532 = vsub.s32 %v529, %v531
      %v533 = vrot.slane %v524, %v532
      %v535 = vunpack.c.l.s4 1983009808
      %v536 = vunpack.c.0.s8 %v535
      %v537 = vlaneseq
      %v538 = vshrl.u32 %v537, 7
      %v539 = vsub.s32 %v536, %v538
      %v540 = vrot.slane %v526, %v539
      %v541 = vcombine.high %v533, %v533
      %v545 = vsel %vm334, %v540, 0
      %547 = vmatprep.subr.bf16.mxu0 0
      %548 = vmatpush1.bf16.msra.mxu0 %v298
      %549 = vmatprep.subr.bf16.mxu0 0
      %550 = vmatpush1.bf16.msra.mxu0 %v299
      %551 = vmatprep.subr.bf16.mxu0 0
      %552 = vmatpush1.bf16.msra.mxu0 %v300
      %553 = vmatprep.subr.bf16.mxu0 0
      %554 = vmatpush1.bf16.msra.mxu0 %v301
      %555 = vmatprep.subr.bf16.mxu0 0
      %556 = vmatpush1.bf16.msra.mxu0 %v302
      %557 = vmatprep.subr.bf16.mxu0 0
      %558 = vmatpush1.bf16.msra.mxu0 %v303
      %559 = vmatprep.subr.bf16.mxu0 0
      %560 = vmatpush1.bf16.msra.mxu0 %v304
      %561 = vmatprep.subr.bf16.mxu0 0
      %562 = vmatpush1.bf16.msra.mxu0 %v305
      %563 = vmatprep.subr.bf16.mxu0 0
      %564 = vmatpush1.bf16.msra.mxu0 %v306
      %565 = vmatprep.subr.bf16.mxu0 0
      %566 = vmatpush1.bf16.msra.mxu0 %v307
      %567 = vmatprep.subr.bf16.mxu0 0
      %568 = vmatpush1.bf16.msra.mxu0 %v308
      %569 = vmatprep.subr.bf16.mxu0 0
      %570 = vmatpush1.bf16.msra.mxu0 %v309
      %571 = vmatprep.subr.bf16.mxu0 0
      %572 = vmatpush1.bf16.msra.mxu0 %v310
      %573 = vmatprep.subr.bf16.mxu0 0
      %574 = vmatpush1.bf16.msra.mxu0 %v311
      %575 = vmatprep.subr.bf16.mxu0 0
      %576 = vmatpush1.bf16.msra.mxu0 %v312
      %577 = vmatprep.subr.bf16.mxu0 0
      %578 = vmatpush1.bf16.msra.mxu0 %v313
      %579 = vmatprep.mubr.bf16.mxu0 %v541
      %580 = vmatmul.mubr.bf16.gmra.mrb[0].mxu0 %v533
      %v581 = vpop.f32.mrb[0].mxu0
      %v582 = vadd.f32 0.0, %v581
      %v583 = vpop.f32.mrb[0].mxu0
      %v584 = vpop.f32.mrb[0].mxu0
      %v585 = vpop.f32.mrb[0].mxu0
      %586 = vdwg.mxu0
      %587 = vmatprep.subr.bf16.mxu0 0
      %588 = vmatpush1.bf16.msra.mxu0 %v314
      %589 = vmatprep.subr.bf16.mxu0 0
      %590 = vmatpush1.bf16.msra.mxu0 %v315
      %591 = vmatprep.subr.bf16.mxu0 0
      %592 = vmatpush1.bf16.msra.mxu0 0
      %593 = vmatprep.subr.bf16.mxu0 0
      %594 = vmatpush1.bf16.msra.mxu0 0
      %595 = vmatprep.subr.bf16.mxu0 0
      %596 = vmatpush1.bf16.msra.mxu0 0
      %597 = vmatprep.subr.bf16.mxu0 0
      %598 = vmatpush1.bf16.msra.mxu0 0
      %599 = vmatprep.subr.bf16.mxu0 0
      %600 = vmatpush1.bf16.msra.mxu0 0
      %601 = vmatprep.subr.bf16.mxu0 0
      %602 = vmatpush1.bf16.msra.mxu0 0
      %603 = vmatprep.subr.bf16.mxu0 0
      %604 = vmatpush1.bf16.msra.mxu0 0
      %605 = vmatprep.subr.bf16.mxu0 0
      %606 = vmatpush1.bf16.msra.mxu0 0
      %607 = vmatprep.subr.bf16.mxu0 0
      %608 = vmatpush1.bf16.msra.mxu0 0
      %609 = vmatprep.subr.bf16.mxu0 0
      %610 = vmatpush1.bf16.msra.mxu0 0
      %611 = vmatprep.subr.bf16.mxu0 0
      %612 = vmatpush1.bf16.msra.mxu0 0
      %613 = vmatprep.subr.bf16.mxu0 0
      %614 = vmatpush1.bf16.msra.mxu0 0
      %615 = vmatprep.subr.bf16.mxu0 0
      %616 = vmatpush1.bf16.msra.mxu0 0
      %617 = vmatprep.subr.bf16.mxu0 0
      %618 = vmatpush1.bf16.msra.mxu0 0
      %619 = vmatprep.mubr.bf16.mxu0 0
      %620 = vmatmul.mubr.bf16.gmra.mrb[0].mxu0 %v545
      %v621 = vpop.f32.mrb[0].mxu0
      %v622 = vadd.f32 %v582, %v621
      %v623 = vpop.f32.mrb[0].mxu0
      %v624 = vpop.f32.mrb[0].mxu0
      %v625 = vpop.f32.mrb[0].mxu0
      %626 = vdwg.mxu0
      %v627 = vmax.f32 %v522, %v622
      %s628 = scalar_lea.vmem %s164, 18
      %v629 = vld [vmem:[%s628] sm:$0x3f]
      %v631 = vcombine.high %v629, %v629
      %v633 = vunpack.c.l.s4 1983009808
      %v634 = vunpack.c.0.s8 %v633
      %v635 = vlaneseq
      %v636 = vshrl.u32 %v635, 7
      %v637 = vsub.s32 %v634, %v636
      %v638 = vrot.slane %v629, %v637
      %v640 = vunpack.c.l.s4 1983009808
      %v641 = vunpack.c.0.s8 %v640
      %v642 = vlaneseq
      %v643 = vshrl.u32 %v642, 7
      %v644 = vsub.s32 %v641, %v643
      %v645 = vrot.slane %v631, %v644
      %v646 = vcombine.high %v638, %v638
      %v650 = vsel %vm334, %v645, 0
      %652 = vmatprep.subr.bf16.mxu0 0
      %653 = vmatpush1.bf16.msra.mxu0 %v298
      %654 = vmatprep.subr.bf16.mxu0 0
      %655 = vmatpush1.bf16.msra.mxu0 %v299
      %656 = vmatprep.subr.bf16.mxu0 0
      %657 = vmatpush1.bf16.msra.mxu0 %v300
      %658 = vmatprep.subr.bf16.mxu0 0
      %659 = vmatpush1.bf16.msra.mxu0 %v301
      %660 = vmatprep.subr.bf16.mxu0 0
      %661 = vmatpush1.bf16.msra.mxu0 %v302
      %662 = vmatprep.subr.bf16.mxu0 0
      %663 = vmatpush1.bf16.msra.mxu0 %v303
      %664 = vmatprep.subr.bf16.mxu0 0
      %665 = vmatpush1.bf16.msra.mxu0 %v304
      %666 = vmatprep.subr.bf16.mxu0 0
      %667 = vmatpush1.bf16.msra.mxu0 %v305
      %668 = vmatprep.subr.bf16.mxu0 0
      %669 = vmatpush1.bf16.msra.mxu0 %v306
      %670 = vmatprep.subr.bf16.mxu0 0
      %671 = vmatpush1.bf16.msra.mxu0 %v307
      %672 = vmatprep.subr.bf16.mxu0 0
      %673 = vmatpush1.bf16.msra.mxu0 %v308
      %674 = vmatprep.subr.bf16.mxu0 0
      %675 = vmatpush1.bf16.msra.mxu0 %v309
      %676 = vmatprep.subr.bf16.mxu0 0
      %677 = vmatpush1.bf16.msra.mxu0 %v310
      %678 = vmatprep.subr.bf16.mxu0 0
      %679 = vmatpush1.bf16.msra.mxu0 %v311
      %680 = vmatprep.subr.bf16.mxu0 0
      %681 = vmatpush1.bf16.msra.mxu0 %v312
      %682 = vmatprep.subr.bf16.mxu0 0
      %683 = vmatpush1.bf16.msra.mxu0 %v313
      %684 = vmatprep.mubr.bf16.mxu0 %v646
      %685 = vmatmul.mubr.bf16.gmra.mrb[0].mxu0 %v638
      %v686 = vpop.f32.mrb[0].mxu0
      %v687 = vadd.f32 0.0, %v686
      %v688 = vpop.f32.mrb[0].mxu0
      %v689 = vpop.f32.mrb[0].mxu0
      %v690 = vpop.f32.mrb[0].mxu0
      %691 = vdwg.mxu0
      %692 = vmatprep.subr.bf16.mxu0 0
      %693 = vmatpush1.bf16.msra.mxu0 %v314
      %694 = vmatprep.subr.bf16.mxu0 0
      %695 = vmatpush1.bf16.msra.mxu0 %v315
      %696 = vmatprep.subr.bf16.mxu0 0
      %697 = vmatpush1.bf16.msra.mxu0 0
      %698 = vmatprep.subr.bf16.mxu0 0
      %699 = vmatpush1.bf16.msra.mxu0 0
      %700 = vmatprep.subr.bf16.mxu0 0
      %701 = vmatpush1.bf16.msra.mxu0 0
      %702 = vmatprep.subr.bf16.mxu0 0
      %703 = vmatpush1.bf16.msra.mxu0 0
      %704 = vmatprep.subr.bf16.mxu0 0
      %705 = vmatpush1.bf16.msra.mxu0 0
      %706 = vmatprep.subr.bf16.mxu0 0
      %707 = vmatpush1.bf16.msra.mxu0 0
      %708 = vmatprep.subr.bf16.mxu0 0
      %709 = vmatpush1.bf16.msra.mxu0 0
      %710 = vmatprep.subr.bf16.mxu0 0
      %711 = vmatpush1.bf16.msra.mxu0 0
      %712 = vmatprep.subr.bf16.mxu0 0
      %713 = vmatpush1.bf16.msra.mxu0 0
      %714 = vmatprep.subr.bf16.mxu0 0
      %715 = vmatpush1.bf16.msra.mxu0 0
      %716 = vmatprep.subr.bf16.mxu0 0
      %717 = vmatpush1.bf16.msra.mxu0 0
      %718 = vmatprep.subr.bf16.mxu0 0
      %719 = vmatpush1.bf16.msra.mxu0 0
      %720 = vmatprep.subr.bf16.mxu0 0
      %721 = vmatpush1.bf16.msra.mxu0 0
      %722 = vmatprep.subr.bf16.mxu0 0
      %723 = vmatpush1.bf16.msra.mxu0 0
      %724 = vmatprep.mubr.bf16.mxu0 0
      %725 = vmatmul.mubr.bf16.gmra.mrb[0].mxu0 %v650
      %v726 = vpop.f32.mrb[0].mxu0
      %v727 = vadd.f32 %v687, %v726
      %v728 = vpop.f32.mrb[0].mxu0
      %v729 = vpop.f32.mrb[0].mxu0
      %v730 = vpop.f32.mrb[0].mxu0
      %731 = vdwg.mxu0
      %v732 = vmax.f32 %v627, %v727
      %v733 = vld [vmem:[%s2] sm:$0x1]
      %v735 = vlaneseq
      %v736 = vshrl.u32 %v735, 7
      %v737 = vsub.s32 0, %v736
      %v738 = vrot.slane %v733, %v737
      %v740 = vadd.f32 %v732, %v738
      %v741 = vmax.f32 %v740, 0.0
      %742 = vst [vmem:[%s168] sm:$0xf] %v741
      %p743 = scmp.lt.s32.totalorder %s14, 1
      %s744 = scalar_select %p743, %s14, 1
      %s745 = smul.addr %s744, 4
      %s746 = scalar_lea.vmem %s3, %s745
      // Predicated region
      $region33: #{traffic_sign_net_forward.6} parent=31 // pred_check
        %p747 = pneg %p100
      $region34: #{traffic_sign_net_forward.6} parent=31 // pred_check_branch
        %749 = sbr.rel (%p747) target = $region36
      $region35: #{traffic_sign_net_forward.6} parent=31 // pred_region
        _
      $region36: #{traffic_sign_net_forward.6} parent=31 // pred_fallthru
        _
    $region32: #{traffic_sign_net_forward.6} parent=5 // pred_fallthru
      _
    %p750 = scmp.le.s32.totalorder 2, %s9
    // Predicated region
    $region37: #{traffic_sign_net_forward.6} parent=5 // pred_check
      %p751 = pneg %p750
    $region38: #{traffic_sign_net_forward.6} parent=5 // pred_check_branch
      %753 = sbr.rel (%p751) target = $region40
    $region39: #{traffic_sign_net_forward.6} parent=5 // pred_region
      %s754 = ssub.s32 %s9, 2
      // Predicated region
      $region41: #{traffic_sign_net_forward.6} parent=39 // pred_check
        %p755 = pneg %p106
      $region42: #{traffic_sign_net_forward.6} parent=39 // pred_check_branch
        %757 = sbr.rel (%p755) target = $region44
      $region43: #{traffic_sign_net_forward.6} parent=39 // pred_region
        %p758 = scmp.lt.s32.totalorder %s15, 1
        %s759 = scalar_select %p758, %s15, 1
        %s760 = smul.addr %s759, 4
        %s761 = scalar_lea.vmem %s3, %s760
      $region44: #{traffic_sign_net_forward.6} parent=39 // pred_fallthru
        _
    $region40: #{traffic_sign_net_forward.6} parent=5 // pred_fallthru
      _
  $region6: #{traffic_sign_net_forward.6} parent=0 // loop_footer
    %s13 = sadd.s32 1, %s9
  $region7: #{traffic_sign_net_forward.6} parent=0 // loop_footer_branch
    %8 = sbr.rel target = $region3
  $region8: #{traffic_sign_net_forward.6} parent=0 // loop_exit
    _

// kernel: traffic_sign_net_forward.7
$region0: #{traffic_sign_net_forward.7}
  #allocation0 [shape = 'u32[]', space=smem, size = 0x4, offset = 0x4, fixed_abs, tag = 'smem constant byte address 0x4 - core index']
  #allocation1 [shape = 'u32[144,128]{1,0:T(1,128)}', space=vmem, size = 0x12000, scoped, tag = 'internal scratch']
  #allocation2 [shape = 'f32[2,256]{1,0:T(2,128)}', space=vmem, size = 0x800, scoped, tag = 'scratch operand']
  %s0 = inlined_call_operand.vmem [shape: bf16[2,256], index: 0, kind: input, shape index: {}]
  %s1 = inlined_call_operand.vmem [shape: bf16[256,256], index: 1, kind: input, shape index: {}]
  %s2 = inlined_call_operand.vmem [shape: f32[1,256], index: 2, kind: input, shape index: {}]
  %s3 = inlined_call_operand.vmem [shape: bf16[256,128], index: 3, kind: input, shape index: {}]
  %s4 = inlined_call_operand.vmem [shape: f32[1,128], index: 4, kind: input, shape index: {}]
  %s5 = inlined_call_operand.hbm [shape: f32[2,128], index: 5, kind: output, shape index: {}]
  %s6 = sld [smem:[#allocation0]]
  $region61: #{traffic_sign_net_forward.7} parent=0
    _
  %s8 = ssub.s32 1, %s6
  %s9 = scalar_select 0, %s8, %s6
  $region1: #{traffic_sign_net_forward.7} parent=0
    #allocation3 [shape = 'u8[1024]{0}', space=vmem, size = 0x400, scoped, tag = 'output window, operand 0, single buffered']
    #allocation4 [shape = 's32[2]{0}', space=sflag, size = 0x8, scoped, tag = 'scoped memory for traffic_sign_net_forward.7']
    %10 = vsyncpa [#allocation4], 0
    loop: start=0, step=1, limit=4
    $region2: #{traffic_sign_net_forward.7} parent=1 // loop_pre_header
      _
    $region3: #{traffic_sign_net_forward.7} parent=1 // loop_header
      %s12 = sphi 0, %s16
      %p13 = scmp.ge.s32.totalorder %s12, 4
      %s22 = sphi 0, %s24
      %s25 = sphi 0, %s22
      %s26 = sphi 0, %s25
      %s42 = sphi 0, %s26
      %s48 = sphi 0, %s50
      %s51 = sphi 0, %s48
      %s52 = sphi 0, %s51
      %s68 = sphi 0, %s52
      %s72 = sphi 0, %s72
      %s74 = sphi 0, %s72
      %s75 = sphi 0, %s74
      %s89 = sphi 0, %s75
      %s93 = sphi 0, %s93
      %s95 = sphi 0, %s93
      %s96 = sphi 0, %s95
      %s110 = sphi 0, %s96
      %s114 = sphi 0, %s114
      %s116 = sphi 0, %s114
      %s117 = sphi 0, %s116
      %s131 = sphi 0, %s117
      %s135 = sphi 0, %s135
      %s137 = sphi 0, %s135
      %s138 = sphi 0, %s137
      %s152 = sphi 0, %s138
    $region4: #{traffic_sign_net_forward.7} parent=1 // loop_header_branch
      %15 = sbr.rel (%p13) target = $region8
    $region5: #{traffic_sign_net_forward.7} parent=1 // loop_body
      %s17 = ssub.s32 %s12, 1
      %s18 = ssub.s32 %s12, 2
      %s19 = sadd.s32 %s12, 1
      %s20 = ssub.s32 %s12, %s19
      %p21 = scmp.eq.s32.totalorder %s20, 0
      %s23 = sadd.s32 %s22, 1
      %s24 = scalar_select %p21, %s22, %s23
      %p27 = pneg %p21
      %p28 = scmp.eq.s32.totalorder %s12, 1
      %p29 = por %p27, %p28
      %p30 = scmp.ne.s32.totalorder %s22, %s25
      %p31 = scmp.eq.s32.totalorder %s12, 0
      %p32 = por %p30, %p31
      %p33 = scmp.ne.s32.totalorder %s22, %s25
      %p34 = scmp.eq.s32.totalorder %s17, 1
      %p35 = por %p33, %p34
      %p36 = scmp.ne.s32.totalorder %s25, %s26
      %p37 = scmp.eq.s32.totalorder %s17, 0
      %p38 = por %p36, %p37
      %p39 = scmp.ne.s32.totalorder %s25, %s26
      %p40 = scmp.eq.s32.totalorder %s18, 1
      %p41 = por %p39, %p40
      %p43 = scmp.ne.s32.totalorder %s26, %s42
      %p44 = scmp.eq.s32.totalorder %s18, 0
      %p45 = por %p43, %p44
      %s46 = ssub.s32 %s12, %s19
      %p47 = scmp.eq.s32.totalorder %s46, 0
      %s49 = sadd.s32 %s48, 1
      %s50 = scalar_select %p47, %s48, %s49
      %p53 = pneg %p47
      %p54 = scmp.eq.s32.totalorder %s12, 1
      %p55 = por %p53, %p54
      %p56 = scmp.ne.s32.totalorder %s48, %s51
      %p57 = scmp.eq.s32.totalorder %s12, 0
      %p58 = por %p56, %p57
      %p59 = scmp.ne.s32.totalorder %s48, %s51
      %p60 = scmp.eq.s32.totalorder %s17, 1
      %p61 = por %p59, %p60
      %p62 = scmp.ne.s32.totalorder %s51, %s52
      %p63 = scmp.eq.s32.totalorder %s17, 0
      %p64 = por %p62, %p63
      %p65 = scmp.ne.s32.totalorder %s51, %s52
      %p66 = scmp.eq.s32.totalorder %s18, 1
      %p67 = por %p65, %p66
      %p69 = scmp.ne.s32.totalorder %s52, %s68
      %p70 = scmp.eq.s32.totalorder %s18, 0
      %p71 = por %p69, %p70
      %s73 = sadd.s32 %s72, 1
      %p76 = scmp.eq.s32.totalorder %s12, 1
      %p77 = scmp.ne.s32.totalorder %s72, %s74
      %p78 = scmp.eq.s32.totalorder %s12, 0
      %p79 = por %p77, %p78
      %p80 = scmp.ne.s32.totalorder %s72, %s74
      %p81 = scmp.eq.s32.totalorder %s17, 1
      %p82 = por %p80, %p81
      %p83 = scmp.ne.s32.totalorder %s74, %s75
      %p84 = scmp.eq.s32.totalorder %s17, 0
      %p85 = por %p83, %p84
      %p86 = scmp.ne.s32.totalorder %s74, %s75
      %p87 = scmp.eq.s32.totalorder %s18, 1
      %p88 = por %p86, %p87
      %p90 = scmp.ne.s32.totalorder %s75, %s89
      %p91 = scmp.eq.s32.totalorder %s18, 0
      %p92 = por %p90, %p91
      %s94 = sadd.s32 %s93, 1
      %p97 = scmp.eq.s32.totalorder %s12, 1
      %p98 = scmp.ne.s32.totalorder %s93, %s95
      %p99 = scmp.eq.s32.totalorder %s12, 0
      %p100 = por %p98, %p99
      %p101 = scmp.ne.s32.totalorder %s93, %s95
      %p102 = scmp.eq.s32.totalorder %s17, 1
      %p103 = por %p101, %p102
      %p104 = scmp.ne.s32.totalorder %s95, %s96
      %p105 = scmp.eq.s32.totalorder %s17, 0
      %p106 = por %p104, %p105
      %p107 = scmp.ne.s32.totalorder %s95, %s96
      %p108 = scmp.eq.s32.totalorder %s18, 1
      %p109 = por %p107, %p108
      %p111 = scmp.ne.s32.totalorder %s96, %s110
      %p112 = scmp.eq.s32.totalorder %s18, 0
      %p113 = por %p111, %p112
      %s115 = sadd.s32 %s114, 1
      %p118 = scmp.eq.s32.totalorder %s12, 1
      %p119 = scmp.ne.s32.totalorder %s114, %s116
      %p120 = scmp.eq.s32.totalorder %s12, 0
      %p121 = por %p119, %p120
      %p122 = scmp.ne.s32.totalorder %s114, %s116
      %p123 = scmp.eq.s32.totalorder %s17, 1
      %p124 = por %p122, %p123
      %p125 = scmp.ne.s32.totalorder %s116, %s117
      %p126 = scmp.eq.s32.totalorder %s17, 0
      %p127 = por %p125, %p126
      %p128 = scmp.ne.s32.totalorder %s116, %s117
      %p129 = scmp.eq.s32.totalorder %s18, 1
      %p130 = por %p128, %p129
      %p132 = scmp.ne.s32.totalorder %s117, %s131
      %p133 = scmp.eq.s32.totalorder %s18, 0
      %p134 = por %p132, %p133
      %s136 = sadd.s32 %s135, 1
      %p139 = scmp.eq.s32.totalorder %s12, 1
      %p140 = scmp.ne.s32.totalorder %s135, %s137
      %p141 = scmp.eq.s32.totalorder %s12, 0
      %p142 = por %p140, %p141
      %p143 = scmp.ne.s32.totalorder %s135, %s137
      %p144 = scmp.eq.s32.totalorder %s17, 1
      %p145 = por %p143, %p144
      %p146 = scmp.ne.s32.totalorder %s137, %s138
      %p147 = scmp.eq.s32.totalorder %s17, 0
      %p148 = por %p146, %p147
      %p149 = scmp.ne.s32.totalorder %s137, %s138
      %p150 = scmp.eq.s32.totalorder %s18, 1
      %p151 = por %p149, %p150
      %p153 = scmp.ne.s32.totalorder %s138, %s152
      %p154 = scmp.eq.s32.totalorder %s18, 0
      %p155 = por %p153, %p154
      %p156 = scmp.le.s32.totalorder 1, %s12
      %p157 = scmp.lt.s32.totalorder %s12, 3
      %p158 = pnand %p156, %p157
      %p159 = pneg %p158
      // Predicated region
      $region9: #{traffic_sign_net_forward.7} parent=5 // pred_check
        _
      $region10: #{traffic_sign_net_forward.7} parent=5 // pred_check_branch
        %161 = sbr.rel (%p158) target = $region12
      $region11: #{traffic_sign_net_forward.7} parent=5 // pred_region
        %s162 = ssub.s32 %s12, 1
        // Predicated region
        $region13: #{traffic_sign_net_forward.7} parent=11 // pred_check
          %p163 = pneg %p85
        $region14: #{traffic_sign_net_forward.7} parent=11 // pred_check_branch
          %165 = sbr.rel (%p163) target = $region16
        $region15: #{traffic_sign_net_forward.7} parent=11 // pred_region
          _
        $region16: #{traffic_sign_net_forward.7} parent=11 // pred_fallthru
          _
        // Predicated region
        $region17: #{traffic_sign_net_forward.7} parent=11 // pred_check
          %p166 = pneg %p106
        $region18: #{traffic_sign_net_forward.7} parent=11 // pred_check_branch
          %168 = sbr.rel (%p166) target = $region20
        $region19: #{traffic_sign_net_forward.7} parent=11 // pred_region
          _
        $region20: #{traffic_sign_net_forward.7} parent=11 // pred_fallthru
          _
        // Predicated region
        $region21: #{traffic_sign_net_forward.7} parent=11 // pred_check
          %p169 = pneg %p127
        $region22: #{traffic_sign_net_forward.7} parent=11 // pred_check_branch
          %171 = sbr.rel (%p169) target = $region24
        $region23: #{traffic_sign_net_forward.7} parent=11 // pred_region
          _
        $region24: #{traffic_sign_net_forward.7} parent=11 // pred_fallthru
          _
      $region12: #{traffic_sign_net_forward.7} parent=5 // pred_fallthru
        _
      %p172 = scmp.lt.s32.totalorder %s12, 2
      // Predicated region
      $region25: #{traffic_sign_net_forward.7} parent=5 // pred_check
        %p173 = pneg %p172
      $region26: #{traffic_sign_net_forward.7} parent=5 // pred_check_branch
        %175 = sbr.rel (%p173) target = $region28
      $region27: #{traffic_sign_net_forward.7} parent=5 // pred_region
        // Predicated region
        $region29: #{traffic_sign_net_forward.7} parent=27 // pred_check
          %p176 = pneg %p32
        $region30: #{traffic_sign_net_forward.7} parent=27 // pred_check_branch
          %178 = sbr.rel (%p176) target = $region32
        $region31: #{traffic_sign_net_forward.7} parent=27 // pred_region
          %p179 = scmp.lt.s32.totalorder %s12, 1
          %s180 = scalar_select %p179, %s12, 1
          %s181 = scalar_lea.vmem %s0, %s180
        $region32: #{traffic_sign_net_forward.7} parent=27 // pred_fallthru
          _
        // Predicated region
        $region33: #{traffic_sign_net_forward.7} parent=27 // pred_check
          %p182 = pneg %p58
        $region34: #{traffic_sign_net_forward.7} parent=27 // pred_check_branch
          %184 = sbr.rel (%p182) target = $region36
        $region35: #{traffic_sign_net_forward.7} parent=27 // pred_region
          %s185 = smul.u32 16, %s12
          %p186 = scmp.lt.s32.totalorder %s185, 31
          %s187 = scalar_select %p186, %s185, 31
          %s188 = smul.addr %s187, 2
          %s189 = smul.addr %s188, 4
          %s190 = scalar_lea.vmem %s1, %s189
          %s191 = smul.u32 16, %s12
        $region36: #{traffic_sign_net_forward.7} parent=27 // pred_fallthru
          _
      $region28: #{traffic_sign_net_forward.7} parent=5 // pred_fallthru
        _
      %p192 = scmp.le.s32.totalorder 1, %s12
      %p193 = scmp.lt.s32.totalorder %s12, 3
      %p194 = pnand %p192, %p193
      %p195 = pneg %p194
      // Predicated region
      $region37: #{traffic_sign_net_forward.7} parent=5 // pred_check
        _
      $region38: #{traffic_sign_net_forward.7} parent=5 // pred_check_branch
        %197 = sbr.rel (%p194) target = $region40
      $region39: #{traffic_sign_net_forward.7} parent=5 // pred_region
        %s198 = ssub.s32 %s12, 1
        %p199 = scmp.lt.s32.totalorder %s17, 1
        %s200 = scalar_select %p199, %s17, 1
        %s201 = scalar_lea.vmem %s0, %s200
        %p202 = pneg %p38
        %p203 = pneg %p35
        %s204 = smul.u32 16, %s17
        %p205 = scmp.lt.s32.totalorder %s204, 31
        %s206 = scalar_select %p205, %s204, 31
        %s207 = smul.addr %s206, 2
        %s208 = smul.addr %s207, 4
        %s209 = scalar_lea.vmem %s1, %s208
        %p210 = pneg %p64
        %p211 = pneg %p61
        %p212 = pneg %p85
        %p213 = pneg %p82
        %p214 = pneg %p106
        %p215 = pneg %p103
        %p216 = pneg %p127
        %p217 = pneg %p124
        %p218 = pneg %p148
        %p219 = pneg %p145
        %p220 = scmp.lt.s32.totalorder %s17, 1
        %s221 = scalar_select %p220, %s17, 1
        %s222 = scalar_lea.vmem %s0, %s221
        %s223 = smul.u32 16, %s17
        %p224 = scmp.lt.s32.totalorder %s223, 31
        %s225 = scalar_select %p224, %s223, 31
        %s226 = smul.addr %s225, 2
        %s227 = smul.addr %s226, 4
        %s228 = scalar_lea.vmem %s1, %s227
        %s229 = smul.u32 16, %s17
        %p231 = scmp.eq.s32.totalorder %s17, 0
        // Predicated region
        $region41: #{traffic_sign_net_forward.7} parent=39 // pred_check
          %p232 = pneg %p231
        $region42: #{traffic_sign_net_forward.7} parent=39 // pred_check_branch
          %234 = sbr.rel (%p232) target = $region44
        $region43: #{traffic_sign_net_forward.7} parent=39 // pred_region
          %235 = vst [vmem:[#allocation2] sm:$0xf] 0.0
        $region44: #{traffic_sign_net_forward.7} parent=39 // pred_fallthru
          _
        %v236 = vld [vmem:[#allocation2] sm:$0xf]
        %v237 = vld [vmem:[%s222] sm:$0x1]
        %v238 = vld [vmem:[%s228] sm:$0xff]
        %v239 = vld [vmem:[%s228 + $0x8] sm:$0xff]
        %v240 = vld [vmem:[%s228 + $0x10] sm:$0xff]
        %v241 = vld [vmem:[%s228 + $0x18] sm:$0xff]
        %v242 = vld [vmem:[%s228 + $0x20] sm:$0xff]
        %v243 = vld [vmem:[%s228 + $0x28] sm:$0xff]
        %v244 = vld [vmem:[%s228 + $0x30] sm:$0xff]
        %v245 = vld [vmem:[%s228 + $0x38] sm:$0xff]
        %v246 = vld [vmem:[%s228 + $0x40] sm:$0xff]
        %v247 = vld [vmem:[%s228 + $0x48] sm:$0xff]
        %v248 = vld [vmem:[%s228 + $0x50] sm:$0xff]
        %v249 = vld [vmem:[%s228 + $0x58] sm:$0xff]
        %v250 = vld [vmem:[%s228 + $0x60] sm:$0xff]
        %v251 = vld [vmem:[%s228 + $0x68] sm:$0xff]
        %v252 = vld [vmem:[%s228 + $0x70] sm:$0xff]
        %v253 = vld [vmem:[%s228 + $0x78] sm:$0xff]
        %v270 = vunpack.c.l.b16 %v238
        %v271 = vunpack.c.h.b16 %v238
        %v272 = vunpack.c.l.b16 %v239
        %v273 = vunpack.c.h.b16 %v239
        %v274 = vunpack.c.l.b16 %v240
        %v275 = vunpack.c.h.b16 %v240
        %v276 = vunpack.c.l.b16 %v241
        %v277 = vunpack.c.h.b16 %v241
        %v278 = vunpack.c.l.b16 %v242
        %v279 = vunpack.c.h.b16 %v242
        %v280 = vunpack.c.l.b16 %v243
        %v281 = vunpack.c.h.b16 %v243
        %v282 = vunpack.c.l.b16 %v244
        %v283 = vunpack.c.h.b16 %v244
        %v284 = vunpack.c.l.b16 %v245
        %v285 = vunpack.c.h.b16 %v245
        %v286 = vunpack.c.l.b16 %v246
        %v287 = vunpack.c.h.b16 %v246
        %v288 = vunpack.c.l.b16 %v247
        %v289 = vunpack.c.h.b16 %v247
        %v290 = vunpack.c.l.b16 %v248
        %v291 = vunpack.c.h.b16 %v248
        %v292 = vunpack.c.l.b16 %v249
        %v293 = vunpack.c.h.b16 %v249
        %v294 = vunpack.c.l.b16 %v250
        %v295 = vunpack.c.h.b16 %v250
        %v296 = vunpack.c.l.b16 %v251
        %v297 = vunpack.c.h.b16 %v251
        %v298 = vunpack.c.l.b16 %v252
        %v299 = vunpack.c.h.b16 %v252
        %v300 = vunpack.c.l.b16 %v253
        %v301 = vunpack.c.h.b16 %v253
        %v302 = vpack.c.b16 %v272, %v270
        %v303 = vpack.c.b16 %v273, %v271
        %v304 = vpack.c.b16 %v276, %v274
        %v305 = vpack.c.b16 %v277, %v275
        %v306 = vpack.c.b16 %v280, %v278
        %v307 = vpack.c.b16 %v281, %v279
        %v308 = vpack.c.b16 %v284, %v282
        %v309 = vpack.c.b16 %v285, %v283
        %v310 = vpack.c.b16 %v288, %v286
        %v311 = vpack.c.b16 %v289, %v287
        %v312 = vpack.c.b16 %v292, %v290
        %v313 = vpack.c.b16 %v293, %v291
        %v314 = vpack.c.b16 %v296, %v294
        %v315 = vpack.c.b16 %v297, %v295
        %v316 = vpack.c.b16 %v300, %v298
        %v317 = vpack.c.b16 %v301, %v299
        %334 = vmatprep.subr.bf16.mxu0 %v303
        %335 = vmatpush1.bf16.msra.mxu0 %v302
        %336 = vmatprep.subr.bf16.mxu0 %v305
        %337 = vmatpush1.bf16.msra.mxu0 %v304
        %338 = vmatprep.subr.bf16.mxu0 %v307
        %339 = vmatpush1.bf16.msra.mxu0 %v306
        %340 = vmatprep.subr.bf16.mxu0 %v309
        %341 = vmatpush1.bf16.msra.mxu0 %v308
        %342 = vmatprep.subr.bf16.mxu0 %v311
        %343 = vmatpush1.bf16.msra.mxu0 %v310
        %344 = vmatprep.subr.bf16.mxu0 %v313
        %345 = vmatpush1.bf16.msra.mxu0 %v312
        %346 = vmatprep.subr.bf16.mxu0 %v315
        %347 = vmatpush1.bf16.msra.mxu0 %v314
        %348 = vmatprep.subr.bf16.mxu0 %v317
        %349 = vmatpush1.bf16.msra.mxu0 %v316
        %350 = vmatprep.subr.bf16.mxu0 0
        %351 = vmatpush1.bf16.msra.mxu0 0
        %352 = vmatprep.subr.bf16.mxu0 0
        %353 = vmatpush1.bf16.msra.mxu0 0
        %354 = vmatprep.subr.bf16.mxu0 0
        %355 = vmatpush1.bf16.msra.mxu0 0
        %356 = vmatprep.subr.bf16.mxu0 0
        %357 = vmatpush1.bf16.msra.mxu0 0
        %358 = vmatprep.subr.bf16.mxu0 0
        %359 = vmatpush1.bf16.msra.mxu0 0
        %360 = vmatprep.subr.bf16.mxu0 0
        %361 = vmatpush1.bf16.msra.mxu0 0
        %362 = vmatprep.subr.bf16.mxu0 0
        %363 = vmatpush1.bf16.msra.mxu0 0
        %364 = vmatprep.subr.bf16.mxu0 0
        %365 = vmatpush1.bf16.msra.mxu0 0
        %366 = vmatprep.mubr.bf16.mxu0 0
        %367 = vmatmul.mubr.bf16.gmra.mrb[0].mxu0 %v237
        %v368 = vpop.f32.mrb[0].mxu0
        %v369 = vadd.f32 0.0, %v368
        %v370 = vpop.f32.mrb[0].mxu0
        %v371 = vadd.f32 0.0, %v370
        %v372 = vpop.f32.mrb[0].mxu0
        %v373 = vpop.f32.mrb[0].mxu0
        %374 = vdwg.mxu0
        %v377 = vcombine.low %v369, %v371
        %v379 = vunpack.c.l.s4 1983009808
        %v380 = vunpack.c.0.s8 %v379
        %v381 = vlaneseq
        %v382 = vshrl.u32 %v381, 7
        %v383 = vsub.s32 %v380, %v382
        %v384 = vrot.slane %v377, %v383
        %v386 = vadd.f32 %v236, %v384
        %387 = vst [vmem:[#allocation2] sm:$0xf] %v386
        %p388 = scmp.eq.s32.totalorder %s17, 1
        // Predicated region
        $region45: #{traffic_sign_net_forward.7} parent=39 // pred_check
          %p389 = pneg %p388
        $region46: #{traffic_sign_net_forward.7} parent=39 // pred_check_branch
          %391 = sbr.rel (%p389) target = $region48
        $region47: #{traffic_sign_net_forward.7} parent=39 // pred_region
          %v392 = vld [vmem:[#allocation2] sm:$0xf]
          %v393 = vld [vmem:[%s2] sm:$0x3]
          %v395 = vlaneseq
          %v396 = vshrl.u32 %v395, 7
          %v397 = vsub.s32 0, %v396
          %v398 = vrot.slane %v393, %v397
          %v399 = vlaneseq
          %v400 = vshrl.u32 %v399, 7
          %v401 = vsub.s32 1, %v400
          %v402 = vrot.slane %v393, %v401
          %v403 = vcombine.low %v398, %v402
          %v405 = vunpack.c.l.s4 1983009808
          %v406 = vunpack.c.0.s8 %v405
          %v407 = vlaneseq
          %v408 = vshrl.u32 %v407, 7
          %v409 = vsub.s32 %v406, %v408
          %v410 = vrot.slane %v403, %v409
          %v412 = vadd.f32 %v392, %v410
          %v413 = vmax.f32 %v412, 0.0
          %v416 = vunpack.c.l.s4 1983009808
          %v417 = vunpack.c.0.s8 %v416
          %v418 = vlaneseq
          %v419 = vshrl.u32 %v418, 7
          %v420 = vsub.s32 %v417, %v419
          %v421 = vrot.slane %v413, %v420
          %v422 = vcombine.high %v421, %v421
          %v425 = vpack.c.bf16 %v421, %v421
          %v426 = vpack.c.bf16 %v422, %v422
          %v427 = vld [vmem:[%s3] sm:$0xf]
          %v428 = vld [vmem:[%s3 + $0x4] sm:$0xf]
          %v429 = vld [vmem:[%s3 + $0x8] sm:$0xf]
          %v430 = vld [vmem:[%s3 + $0xc] sm:$0xf]
          %v431 = vld [vmem:[%s3 + $0x10] sm:$0xf]
          %v432 = vld [vmem:[%s3 + $0x14] sm:$0xf]
          %v433 = vld [vmem:[%s3 + $0x18] sm:$0xf]
          %v434 = vld [vmem:[%s3 + $0x1c] sm:$0xf]
          %v435 = vld [vmem:[%s3 + $0x20] sm:$0xf]
          %v436 = vld [vmem:[%s3 + $0x24] sm:$0xf]
          %v437 = vld [vmem:[%s3 + $0x28] sm:$0xf]
          %v438 = vld [vmem:[%s3 + $0x2c] sm:$0xf]
          %v439 = vld [vmem:[%s3 + $0x30] sm:$0xf]
          %v440 = vld [vmem:[%s3 + $0x34] sm:$0xf]
          %v441 = vld [vmem:[%s3 + $0x38] sm:$0xf]
          %v442 = vld [vmem:[%s3 + $0x3c] sm:$0xf]
          %v443 = vld [vmem:[%s3 + $0x40] sm:$0xf]
          %v444 = vld [vmem:[%s3 + $0x44] sm:$0xf]
          %v445 = vld [vmem:[%s3 + $0x48] sm:$0xf]
          %v446 = vld [vmem:[%s3 + $0x4c] sm:$0xf]
          %v447 = vld [vmem:[%s3 + $0x50] sm:$0xf]
          %v448 = vld [vmem:[%s3 + $0x54] sm:$0xf]
          %v449 = vld [vmem:[%s3 + $0x58] sm:$0xf]
          %v450 = vld [vmem:[%s3 + $0x5c] sm:$0xf]
          %v451 = vld [vmem:[%s3 + $0x60] sm:$0xf]
          %v452 = vld [vmem:[%s3 + $0x64] sm:$0xf]
          %v453 = vld [vmem:[%s3 + $0x68] sm:$0xf]
          %v454 = vld [vmem:[%s3 + $0x6c] sm:$0xf]
          %v455 = vld [vmem:[%s3 + $0x70] sm:$0xf]
          %v456 = vld [vmem:[%s3 + $0x74] sm:$0xf]
          %v457 = vld [vmem:[%s3 + $0x78] sm:$0xf]
          %v458 = vld [vmem:[%s3 + $0x7c] sm:$0xf]
          %v459 = vld [vmem:[%s4] sm:$0x1]
          %v461 = vlaneseq
          %v462 = vshrl.u32 %v461, 7
          %v463 = vsub.s32 0, %v462
          %v464 = vrot.slane %v459, %v463
          %v498 = vunpack.c.l.b16 %v427
          %v499 = vunpack.c.l.b16 %v428
          %v500 = vunpack.c.l.b16 %v429
          %v501 = vunpack.c.l.b16 %v430
          %v502 = vunpack.c.l.b16 %v431
          %v503 = vunpack.c.l.b16 %v432
          %v504 = vunpack.c.l.b16 %v433
          %v505 = vunpack.c.l.b16 %v434
          %v506 = vunpack.c.l.b16 %v435
          %v507 = vunpack.c.l.b16 %v436
          %v508 = vunpack.c.l.b16 %v437
          %v509 = vunpack.c.l.b16 %v438
          %v510 = vunpack.c.l.b16 %v439
          %v511 = vunpack.c.l.b16 %v440
          %v512 = vunpack.c.l.b16 %v441
          %v513 = vunpack.c.l.b16 %v442
          %v514 = vunpack.c.l.b16 %v443
          %v515 = vunpack.c.l.b16 %v444
          %v516 = vunpack.c.l.b16 %v445
          %v517 = vunpack.c.l.b16 %v446
          %v518 = vunpack.c.l.b16 %v447
          %v519 = vunpack.c.l.b16 %v448
          %v520 = vunpack.c.l.b16 %v449
          %v521 = vunpack.c.l.b16 %v450
          %v522 = vunpack.c.l.b16 %v451
          %v523 = vunpack.c.l.b16 %v452
          %v524 = vunpack.c.l.b16 %v453
          %v525 = vunpack.c.l.b16 %v454
          %v526 = vunpack.c.l.b16 %v455
          %v527 = vunpack.c.l.b16 %v456
          %v528 = vunpack.c.l.b16 %v457
          %v529 = vunpack.c.l.b16 %v458
          %v530 = vpack.c.b16 %v499, %v498
          %v531 = vpack.c.b16 %v501, %v500
          %v532 = vpack.c.b16 %v503, %v502
          %v533 = vpack.c.b16 %v505, %v504
          %v534 = vpack.c.b16 %v507, %v506
          %v535 = vpack.c.b16 %v509, %v508
          %v536 = vpack.c.b16 %v511, %v510
          %v537 = vpack.c.b16 %v513, %v512
          %v538 = vpack.c.b16 %v515, %v514
          %v539 = vpack.c.b16 %v517, %v516
          %v540 = vpack.c.b16 %v519, %v518
          %v541 = vpack.c.b16 %v521, %v520
          %v542 = vpack.c.b16 %v523, %v522
          %v543 = vpack.c.b16 %v525, %v524
          %v544 = vpack.c.b16 %v527, %v526
          %v545 = vpack.c.b16 %v529, %v528
          %562 = vmatprep.subr.bf16.mxu0 0
          %563 = vmatpush1.bf16.msra.mxu0 %v530
          %564 = vmatprep.subr.bf16.mxu0 0
          %565 = vmatpush1.bf16.msra.mxu0 %v531
          %566 = vmatprep.subr.bf16.mxu0 0
          %567 = vmatpush1.bf16.msra.mxu0 %v532
          %568 = vmatprep.subr.bf16.mxu0 0
          %569 = vmatpush1.bf16.msra.mxu0 %v533
          %570 = vmatprep.subr.bf16.mxu0 0
          %571 = vmatpush1.bf16.msra.mxu0 %v534
          %572 = vmatprep.subr.bf16.mxu0 0
          %573 = vmatpush1.bf16.msra.mxu0 %v535
          %574 = vmatprep.subr.bf16.mxu0 0
          %575 = vmatpush1.bf16.msra.mxu0 %v536
          %576 = vmatprep.subr.bf16.mxu0 0
          %577 = vmatpush1.bf16.msra.mxu0 %v537
          %578 = vmatprep.subr.bf16.mxu0 0
          %579 = vmatpush1.bf16.msra.mxu0 %v538
          %580 = vmatprep.subr.bf16.mxu0 0
          %581 = vmatpush1.bf16.msra.mxu0 %v539
          %582 = vmatprep.subr.bf16.mxu0 0
          %583 = vmatpush1.bf16.msra.mxu0 %v540
          %584 = vmatprep.subr.bf16.mxu0 0
          %585 = vmatpush1.bf16.msra.mxu0 %v541
          %586 = vmatprep.subr.bf16.mxu0 0
          %587 = vmatpush1.bf16.msra.mxu0 %v542
          %588 = vmatprep.subr.bf16.mxu0 0
          %589 = vmatpush1.bf16.msra.mxu0 %v543
          %590 = vmatprep.subr.bf16.mxu0 0
          %591 = vmatpush1.bf16.msra.mxu0 %v544
          %592 = vmatprep.subr.bf16.mxu0 0
          %593 = vmatpush1.bf16.msra.mxu0 %v545
          %594 = vmatprep.mubr.bf16.mxu0 %v426
          %595 = vmatmul.mubr.bf16.gmra.mrb[0].mxu0 %v425
          %v596 = vpop.f32.mrb[0].mxu0
          %v597 = vadd.f32 %v464, %v596
          %v598 = vpop.f32.mrb[0].mxu0
          %v599 = vpop.f32.mrb[0].mxu0
          %v600 = vpop.f32.mrb[0].mxu0
          %601 = vdwg.mxu0
          %602 = vst [vmem:[#allocation3] sm:$0x3] %v597
        $region48: #{traffic_sign_net_forward.7} parent=39 // pred_fallthru
          _
        // Predicated region
        $region49: #{traffic_sign_net_forward.7} parent=39 // pred_check
          %p603 = pneg %p145
        $region50: #{traffic_sign_net_forward.7} parent=39 // pred_check_branch
          %605 = sbr.rel (%p603) target = $region52
        $region51: #{traffic_sign_net_forward.7} parent=39 // pred_region
          %s607 = ssub.s32 32, 32
          %608 = vsyncadd [#allocation4], %s607
          %s610 = sshll.u32 [#allocation3], 4
          %s611 = int_to_ptr.vmem [resolvable:$true] %s610
          %613 = dma.vmem_to_hbm [thread:$0]  %s611, 32, %s5, [#allocation4]
        $region52: #{traffic_sign_net_forward.7} parent=39 // pred_fallthru
          _
        // Predicated region
        $region53: #{traffic_sign_net_forward.7} parent=39 // pred_check
          %p614 = pneg %p145
        $region54: #{traffic_sign_net_forward.7} parent=39 // pred_check_branch
          %616 = sbr.rel (%p614) target = $region56
        $region55: #{traffic_sign_net_forward.7} parent=39 // pred_region
          %617 = dma.done [#allocation4], 32
        $region56: #{traffic_sign_net_forward.7} parent=39 // pred_fallthru
          _
      $region40: #{traffic_sign_net_forward.7} parent=5 // pred_fallthru
        _
      %p618 = scmp.le.s32.totalorder 2, %s12
      // Predicated region
      $region57: #{traffic_sign_net_forward.7} parent=5 // pred_check
        %p619 = pneg %p618
      $region58: #{traffic_sign_net_forward.7} parent=5 // pred_check_branch
        %621 = sbr.rel (%p619) target = $region60
      $region59: #{traffic_sign_net_forward.7} parent=5 // pred_region
        %s622 = ssub.s32 %s12, 2
      $region60: #{traffic_sign_net_forward.7} parent=5 // pred_fallthru
        _
    $region6: #{traffic_sign_net_forward.7} parent=1 // loop_footer
      %s16 = sadd.s32 1, %s12
    $region7: #{traffic_sign_net_forward.7} parent=1 // loop_footer_branch
      %11 = sbr.rel target = $region3
    $region8: #{traffic_sign_net_forward.7} parent=1 // loop_exit
      _
    %623 = vsyncpa [#allocation4], 1
    %s624 = scalar_lea.sflag [#allocation4], 1
    %625 = vsyncpa %s624, 1

</llo_original>
